<compile_context>
chip_gen: v7x
topology: tpu7x:2x2x1
jax: 0.10.0
libtpu: 0.0.40
codegen_flags: <defaults>
</compile_context>

<pallas_src>
import functools
import math

import jax
import jax.numpy as jnp
from jax.experimental import pallas as pl
from jax.experimental.pallas import tpu as pltpu

_LN_EPS = 1e-5  # PyTorch nn.LayerNorm default eps


def _layer_norm(h, gamma, beta):
    # h: (S, E) f32; gamma/beta: (1, E)
    mu = jnp.mean(h, axis=-1, keepdims=True)
    xc = h - mu
    var = jnp.mean(xc * xc, axis=-1, keepdims=True)
    return xc * jax.lax.rsqrt(var + _LN_EPS) * gamma + beta


def _gelu_tanh(h):
    # tanh-approximate GELU (EUP tanh); written with explicit muls (no integer_pow).
    # TODO(synk): PyTorch nn.GELU() default is the exact erf formulation; the tanh
    # approximation (max abs err ~1e-3) is used because lax.erf lowering is not
    # guaranteed in Mosaic.
    c = 0.7978845608028654  # sqrt(2/pi)
    return 0.5 * h * (1.0 + jnp.tanh(c * (h + 0.044715 * h * h * h)))


def encoder_layer_kernel(x_ref, g1_ref, be1_ref, wqkv_ref, bqkv_ref, wo_ref, bo_ref,
                         g2_ref, be2_ref, w1_ref, b1_ref, w2_ref, b2_ref,
                         o_ref, *, num_heads):
    S, E = x_ref.shape[1], x_ref.shape[2]
    head_dim = E // num_heads
    scale = 1.0 / math.sqrt(head_dim)

    xf = x_ref[0].astype(jnp.float32)                        # (S, E) f32, cast once

    # ---- LayerNorm 1 (pre-norm) --------------------------------------------
    h1 = _layer_norm(xf, g1_ref[...], be1_ref[...])          # (S, E) f32

    # ---- Fused QKV projection: one E-wide (S,E)@(E,3E) matmul --------------
    qkv = jnp.dot(h1.astype(wqkv_ref.dtype), wqkv_ref[...],
                  preferred_element_type=jnp.float32)
    qkv = qkv + bqkv_ref[...]                                # single lane-dense bias add
    q = qkv[:, 0:E] * scale                                  # fold softmax scale once
    k = qkv[:, E:2 * E]
    v = qkv[:, 2 * E:3 * E]

    # ---- Per-head attention, accumulating the output projection ------------
    # concat_h(head_h) @ Wo + bo == sum_h head_h @ Wo[h*Hd:(h+1)*Hd, :] + bo
    # Accumulating keeps every matmul output E lanes wide (no Hd-wide masked
    # stores, no concat scratch).  The accumulator is seeded with x + bo so the
    # first residual and the output-projection bias come for free.
    # (Small static unroll; only one head's q/k/scores are live per iteration.
    #  For large H, switch to lax.fori_loop.)
    attn = xf + bo_ref[...]                                  # (S, E) f32
    for h in range(num_heads):
        lo = h * head_dim
        q_h = q[:, lo:lo + head_dim]
        k_h = k[:, lo:lo + head_dim]
        v_h = v[:, lo:lo + head_dim]
        scores = jnp.dot(q_h, k_h.T, preferred_element_type=jnp.float32)      # (S, S)
        m = jnp.max(scores, axis=-1, keepdims=True)
        p = jnp.exp(scores - m)
        denom = jnp.sum(p, axis=-1, keepdims=True)
        w = p * pl.reciprocal(denom, approx=True)            # EUP vrcp, ~free
        head_out = jnp.dot(w, v_h, preferred_element_type=jnp.float32)        # (S, Hd)
        attn = attn + jnp.dot(head_out.astype(wo_ref.dtype),
                              wo_ref[lo:lo + head_dim, :],
                              preferred_element_type=jnp.float32)             # (S, E)

    # first residual already folded into `attn`:  x1 = x + attention(LN1(x))
    x1 = attn

    # ---- LayerNorm 2 + FeedForward + second residual ------------------------
    h2 = _layer_norm(x1, g2_ref[...], be2_ref[...])
    ff = jnp.dot(h2.astype(w1_ref.dtype), w1_ref[...],
                 preferred_element_type=jnp.float32) + b1_ref[...]
    ff = _gelu_tanh(ff)
    ff = jnp.dot(ff.astype(w2_ref.dtype), w2_ref[...],
                 preferred_element_type=jnp.float32) + b2_ref[...]
    # nn.Dropout is a no-op at inference time.
    out = x1 + ff

    o_ref[0] = out.astype(o_ref.dtype)


def transformer_encoder_layer(x, gamma1, beta1, wqkv, bqkv, wo, bo,
                              gamma2, beta2, w1, b1, w2, b2, *, num_heads):
    B, S, E = x.shape
    F = w1.shape[1]
    kernel = functools.partial(encoder_layer_kernel, num_heads=num_heads)

    def const_spec(shape):
        # Weights/params: constant block index across the grid -> DMA'd once,
        # resident in VMEM for all batch steps.
        # TODO(synk): for very large E/F or long S, add a query-tile grid axis
        # ("parallel") with flash-style K/V streaming and single-buffered weights
        # to fit the v7x 64 MiB VMEM budget; full residency is used here.
        return pl.BlockSpec(shape, lambda b: (0,) * len(shape))

    return pl.pallas_call(
        kernel,
        out_shape=jax.ShapeDtypeStruct((B, S, E), x.dtype),
        grid_spec=pltpu.PrefetchScalarGridSpec(
            num_scalar_prefetch=0,
            grid=(B,),
            in_specs=[
                pl.BlockSpec((1, S, E), lambda b: (b, 0, 0)),   # x
                const_spec((1, E)),                             # gamma1
                const_spec((1, E)),                             # beta1
                const_spec((E, 3 * E)),                         # wqkv
                const_spec((1, 3 * E)),                         # bqkv
                const_spec((E, E)),                             # wo
                const_spec((1, E)),                             # bo
                const_spec((1, E)),                             # gamma2
                const_spec((1, E)),                             # beta2
                const_spec((E, F)),                             # w1
                const_spec((1, F)),                             # b1
                const_spec((F, E)),                             # w2
                const_spec((1, E)),                             # b2
            ],
            out_specs=pl.BlockSpec((1, S, E), lambda b: (b, 0, 0)),
        ),
        compiler_params=pltpu.CompilerParams(
            dimension_semantics=("parallel",)),
    )(x, gamma1, beta1, wqkv, bqkv, wo, bo, gamma2, beta2, w1, b1, w2, b2)


def reference_encoder_layer(x, gamma1, beta1, wqkv, bqkv, wo, bo,
                            gamma2, beta2, w1, b1, w2, b2, num_heads):
    # pure-JAX reference mirroring the PyTorch TransformerEncoderLayer forward
    E = x.shape[-1]
    Hd = E // num_heads

    def ln(h, g, be):
        mu = jnp.mean(h, axis=-1, keepdims=True)
        var = jnp.mean((h - mu) ** 2, axis=-1, keepdims=True)
        return (h - mu) / jnp.sqrt(var + _LN_EPS) * g + be

    h1 = ln(x, gamma1, beta1)
    qkv = h1 @ wqkv + bqkv
    q, k, v = qkv[..., :E], qkv[..., E:2 * E], qkv[..., 2 * E:]
    heads = []
    for h in range(num_heads):
        qh = q[..., h * Hd:(h + 1) * Hd]
        kh = k[..., h * Hd:(h + 1) * Hd]
        vh = v[..., h * Hd:(h + 1) * Hd]
        s = jnp.einsum("bqd,bkd->bqk", qh, kh) / math.sqrt(Hd)
        w = jax.nn.softmax(s, axis=-1)
        heads.append(jnp.einsum("bqk,bkd->bqd", w, vh))
    attn = jnp.concatenate(heads, axis=-1) @ wo + bo
    x1 = x + attn
    h2 = ln(x1, gamma2, beta2)
    ff = _gelu_tanh(h2 @ w1 + b1) @ w2 + b2
    return x1 + ff


if __name__ == "__main__":
    B, S, E, H = 2, 8, 32, 4
    F = 4 * E  # intermediate_size

    key = jax.random.PRNGKey(0)
    ks = jax.random.split(key, 12)
    x = jax.random.normal(ks[0], (B, S, E), dtype=jnp.float32)
    wqkv = jax.random.normal(ks[1], (E, 3 * E), dtype=jnp.float32) * 0.1
    bqkv = jax.random.normal(ks[2], (1, 3 * E), dtype=jnp.float32) * 0.1
    wo = jax.random.normal(ks[3], (E, E), dtype=jnp.float32) * 0.1
    bo = jax.random.normal(ks[4], (1, E), dtype=jnp.float32) * 0.1
    w1 = jax.random.normal(ks[5], (E, F), dtype=jnp.float32) * 0.1
    b1 = jax.random.normal(ks[6], (1, F), dtype=jnp.float32) * 0.1
    w2 = jax.random.normal(ks[7], (F, E), dtype=jnp.float32) * 0.1
    b2 = jax.random.normal(ks[8], (1, E), dtype=jnp.float32) * 0.1
    gamma1 = 1.0 + 0.1 * jax.random.normal(ks[9], (1, E), dtype=jnp.float32)
    beta1 = 0.1 * jax.random.normal(ks[10], (1, E), dtype=jnp.float32)
    gamma2 = 1.0 + 0.1 * jax.random.normal(ks[11], (1, E), dtype=jnp.float32)
    beta2 = jnp.zeros((1, E), dtype=jnp.float32)

    out = transformer_encoder_layer(x, gamma1, beta1, wqkv, bqkv, wo, bo,
                                    gamma2, beta2, w1, b1, w2, b2, num_heads=H)
    out = jax.block_until_ready(out)

    ref = reference_encoder_layer(x, gamma1, beta1, wqkv, bqkv, wo, bo,
                                  gamma2, beta2, w1, b1, w2, b2, H)
    assert out.shape == (B, S, E)
    err = jnp.max(jnp.abs(out - ref))
    # Tolerance relaxed for pl.reciprocal(approx=True) and MXU f32-pass differences.
    assert jnp.allclose(out, ref, atol=1e-2, rtol=1e-2), f"max err {err}"
    print("KERNEL_OK")
</pallas_src>

<mosaic_0001>
module attributes {stable_mosaic.version = 11 : i64} {
  func.func @encoder_layer_kernel(%arg0: i32, %arg1: memref<1x8x32xf32, #tpu.memory_space<vmem>>, %arg2: memref<1x32xf32, #tpu.memory_space<vmem>>, %arg3: memref<1x32xf32, #tpu.memory_space<vmem>>, %arg4: memref<32x96xf32, #tpu.memory_space<vmem>>, %arg5: memref<1x96xf32, #tpu.memory_space<vmem>>, %arg6: memref<32x32xf32, #tpu.memory_space<vmem>>, %arg7: memref<1x32xf32, #tpu.memory_space<vmem>>, %arg8: memref<1x32xf32, #tpu.memory_space<vmem>>, %arg9: memref<1x32xf32, #tpu.memory_space<vmem>>, %arg10: memref<32x128xf32, #tpu.memory_space<vmem>>, %arg11: memref<1x128xf32, #tpu.memory_space<vmem>>, %arg12: memref<128x32xf32, #tpu.memory_space<vmem>>, %arg13: memref<1x32xf32, #tpu.memory_space<vmem>>, %arg14: memref<1x8x32xf32, #tpu.memory_space<vmem>>) attributes {dimension_semantics = [#tpu.dimension_semantics<parallel>], iteration_bounds = array<i64: 2>, scalar_prefetch = 0 : i64, scratch_operands = 0 : i64, tpu.core_type = #tpu.core_type<tc>, window_params = [{transform_indices = @transform_0, window_bounds = array<i64: 1, 8, 32>}, {pipeline_mode = #tpu.pipeline_mode<synchronous>, transform_indices = @transform_1, window_bounds = array<i64: 1, 32>}, {pipeline_mode = #tpu.pipeline_mode<synchronous>, transform_indices = @transform_2, window_bounds = array<i64: 1, 32>}, {pipeline_mode = #tpu.pipeline_mode<synchronous>, transform_indices = @transform_3, window_bounds = array<i64: 32, 96>}, {pipeline_mode = #tpu.pipeline_mode<synchronous>, transform_indices = @transform_4, window_bounds = array<i64: 1, 96>}, {pipeline_mode = #tpu.pipeline_mode<synchronous>, transform_indices = @transform_5, window_bounds = array<i64: 32, 32>}, {pipeline_mode = #tpu.pipeline_mode<synchronous>, transform_indices = @transform_6, window_bounds = array<i64: 1, 32>}, {pipeline_mode = #tpu.pipeline_mode<synchronous>, transform_indices = @transform_7, window_bounds = array<i64: 1, 32>}, {pipeline_mode = #tpu.pipeline_mode<synchronous>, transform_indices = @transform_8, window_bounds = array<i64: 1, 32>}, {pipeline_mode = #tpu.pipeline_mode<synchronous>, transform_indices = @transform_9, window_bounds = array<i64: 32, 128>}, {pipeline_mode = #tpu.pipeline_mode<synchronous>, transform_indices = @transform_10, window_bounds = array<i64: 1, 128>}, {pipeline_mode = #tpu.pipeline_mode<synchronous>, transform_indices = @transform_11, window_bounds = array<i64: 128, 32>}, {pipeline_mode = #tpu.pipeline_mode<synchronous>, transform_indices = @transform_12, window_bounds = array<i64: 1, 32>}, {transform_indices = @transform_13, window_bounds = array<i64: 1, 8, 32>}]} {
    %c0 = arith.constant 0 : index
    %c0_0 = arith.constant 0 : index
    %c0_1 = arith.constant 0 : index
    %0 = vector.load %arg1[%c0, %c0_0, %c0_1] : memref<1x8x32xf32, #tpu.memory_space<vmem>>, vector<1x8x32xf32>
    %1 = vector.shape_cast %0 : vector<1x8x32xf32> to vector<8x32xf32>
    %c0_2 = arith.constant 0 : index
    %c0_3 = arith.constant 0 : index
    %2 = vector.load %arg2[%c0_2, %c0_3] : memref<1x32xf32, #tpu.memory_space<vmem>>, vector<1x32xf32>
    %c0_4 = arith.constant 0 : index
    %c0_5 = arith.constant 0 : index
    %3 = vector.load %arg3[%c0_4, %c0_5] : memref<1x32xf32, #tpu.memory_space<vmem>>, vector<1x32xf32>
    %cst = arith.constant dense<0.000000e+00> : vector<8xf32>
    %4 = vector.multi_reduction <add>, %1, %cst [1] : vector<8x32xf32> to vector<8xf32>
    %5 = vector.shape_cast %4 : vector<8xf32> to vector<8x1xf32>
    %cst_6 = arith.constant 3.200000e+01 : f32
    %6 = vector.broadcast %cst_6 : f32 to vector<8x1xf32>
    %7 = arith.divf %5, %6 : vector<8x1xf32>
    %8 = vector.broadcast %7 : vector<8x1xf32> to vector<8x32xf32>
    %9 = arith.subf %1, %8 : vector<8x32xf32>
    %10 = arith.mulf %9, %9 : vector<8x32xf32>
    %cst_7 = arith.constant dense<0.000000e+00> : vector<8xf32>
    %11 = vector.multi_reduction <add>, %10, %cst_7 [1] : vector<8x32xf32> to vector<8xf32>
    %12 = vector.shape_cast %11 : vector<8xf32> to vector<8x1xf32>
    %cst_8 = arith.constant 3.200000e+01 : f32
    %13 = vector.broadcast %cst_8 : f32 to vector<8x1xf32>
    %14 = arith.divf %12, %13 : vector<8x1xf32>
    %cst_9 = arith.constant 9.99999974E-6 : f32
    %15 = vector.broadcast %cst_9 : f32 to vector<8x1xf32>
    %16 = arith.addf %14, %15 : vector<8x1xf32>
    %17 = math.rsqrt %16 : vector<8x1xf32>
    %18 = vector.broadcast %17 : vector<8x1xf32> to vector<8x32xf32>
    %19 = arith.mulf %9, %18 : vector<8x32xf32>
    %20 = vector.broadcast %2 : vector<1x32xf32> to vector<8x32xf32>
    %21 = arith.mulf %19, %20 : vector<8x32xf32>
    %22 = vector.broadcast %3 : vector<1x32xf32> to vector<8x32xf32>
    %23 = arith.addf %21, %22 : vector<8x32xf32>
    %c0_10 = arith.constant 0 : index
    %c0_11 = arith.constant 0 : index
    %24 = vector.load %arg4[%c0_10, %c0_11] : memref<32x96xf32, #tpu.memory_space<vmem>>, vector<32x96xf32>
    %cst_12 = arith.constant dense<0.000000e+00> : vector<8x96xf32>
    %25 = tpu.matmul %23, %24, %cst_12 {dimension_numbers = #tpu.dot_dimension_numbers<[1], [0], [0], [1], [0, 0, 1, 1], [], []>} : vector<8x32xf32>, vector<32x96xf32>, vector<8x96xf32> -> vector<8x96xf32>
    %c0_13 = arith.constant 0 : index
    %c0_14 = arith.constant 0 : index
    %26 = vector.load %arg5[%c0_13, %c0_14] : memref<1x96xf32, #tpu.memory_space<vmem>>, vector<1x96xf32>
    %27 = vector.broadcast %26 : vector<1x96xf32> to vector<8x96xf32>
    %28 = arith.addf %25, %27 : vector<8x96xf32>
    %29 = vector.extract_strided_slice %28 {offsets = [0, 0], sizes = [8, 32], strides = [1, 1]} : vector<8x96xf32> to vector<8x32xf32>
    %cst_15 = arith.constant 0.353553385 : f32
    %30 = vector.broadcast %cst_15 : f32 to vector<8x32xf32>
    %31 = arith.mulf %29, %30 : vector<8x32xf32>
    %32 = vector.extract_strided_slice %28 {offsets = [0, 32], sizes = [8, 32], strides = [1, 1]} : vector<8x96xf32> to vector<8x32xf32>
    %33 = vector.extract_strided_slice %28 {offsets = [0, 64], sizes = [8, 32], strides = [1, 1]} : vector<8x96xf32> to vector<8x32xf32>
    %c0_16 = arith.constant 0 : index
    %c0_17 = arith.constant 0 : index
    %34 = vector.load %arg7[%c0_16, %c0_17] : memref<1x32xf32, #tpu.memory_space<vmem>>, vector<1x32xf32>
    %35 = vector.broadcast %34 : vector<1x32xf32> to vector<8x32xf32>
    %36 = arith.addf %1, %35 : vector<8x32xf32>
    %37 = vector.extract_strided_slice %31 {offsets = [0, 0], sizes = [8, 8], strides = [1, 1]} : vector<8x32xf32> to vector<8x8xf32>
    %38 = vector.extract_strided_slice %32 {offsets = [0, 0], sizes = [8, 8], strides = [1, 1]} : vector<8x32xf32> to vector<8x8xf32>
    %39 = vector.extract_strided_slice %33 {offsets = [0, 0], sizes = [8, 8], strides = [1, 1]} : vector<8x32xf32> to vector<8x8xf32>
    %40 = tpu.transpose %38, [1, 0] : vector<8x8xf32> -> vector<8x8xf32>
    %cst_18 = arith.constant dense<0.000000e+00> : vector<8x8xf32>
    %41 = tpu.matmul %37, %40, %cst_18 {dimension_numbers = #tpu.dot_dimension_numbers<[1], [0], [0], [1], [0, 0, 1, 1], [], []>} : vector<8x8xf32>, vector<8x8xf32>, vector<8x8xf32> -> vector<8x8xf32>
    %cst_19 = arith.constant dense<0xFF800000> : vector<8xf32>
    %42 = vector.multi_reduction <maximumf>, %41, %cst_19 [1] : vector<8x8xf32> to vector<8xf32>
    %43 = vector.shape_cast %42 : vector<8xf32> to vector<8x1xf32>
    %44 = vector.broadcast %43 : vector<8x1xf32> to vector<8x8xf32>
    %45 = arith.subf %41, %44 : vector<8x8xf32>
    %46 = math.exp %45 : vector<8x8xf32>
    %cst_20 = arith.constant dense<0.000000e+00> : vector<8xf32>
    %47 = vector.multi_reduction <add>, %46, %cst_20 [1] : vector<8x8xf32> to vector<8xf32>
    %48 = vector.shape_cast %47 : vector<8xf32> to vector<8x1xf32>
    %49 = tpu.reciprocal %48 {approx = true} : vector<8x1xf32> -> vector<8x1xf32>
    %50 = vector.broadcast %49 : vector<8x1xf32> to vector<8x8xf32>
    %51 = arith.mulf %46, %50 : vector<8x8xf32>
    %cst_21 = arith.constant dense<0.000000e+00> : vector<8x8xf32>
    %52 = tpu.matmul %51, %39, %cst_21 {dimension_numbers = #tpu.dot_dimension_numbers<[1], [0], [0], [1], [0, 0, 1, 1], [], []>} : vector<8x8xf32>, vector<8x8xf32>, vector<8x8xf32> -> vector<8x8xf32>
    %c0_22 = arith.constant 0 : index
    %c0_23 = arith.constant 0 : index
    %53 = vector.load %arg6[%c0_22, %c0_23] : memref<32x32xf32, #tpu.memory_space<vmem>>, vector<8x32xf32>
    %cst_24 = arith.constant dense<0.000000e+00> : vector<8x32xf32>
    %54 = tpu.matmul %52, %53, %cst_24 {dimension_numbers = #tpu.dot_dimension_numbers<[1], [0], [0], [1], [0, 0, 1, 1], [], []>} : vector<8x8xf32>, vector<8x32xf32>, vector<8x32xf32> -> vector<8x32xf32>
    %55 = arith.addf %36, %54 : vector<8x32xf32>
    %56 = vector.extract_strided_slice %31 {offsets = [0, 8], sizes = [8, 8], strides = [1, 1]} : vector<8x32xf32> to vector<8x8xf32>
    %57 = vector.extract_strided_slice %32 {offsets = [0, 8], sizes = [8, 8], strides = [1, 1]} : vector<8x32xf32> to vector<8x8xf32>
    %58 = vector.extract_strided_slice %33 {offsets = [0, 8], sizes = [8, 8], strides = [1, 1]} : vector<8x32xf32> to vector<8x8xf32>
    %59 = tpu.transpose %57, [1, 0] : vector<8x8xf32> -> vector<8x8xf32>
    %cst_25 = arith.constant dense<0.000000e+00> : vector<8x8xf32>
    %60 = tpu.matmul %56, %59, %cst_25 {dimension_numbers = #tpu.dot_dimension_numbers<[1], [0], [0], [1], [0, 0, 1, 1], [], []>} : vector<8x8xf32>, vector<8x8xf32>, vector<8x8xf32> -> vector<8x8xf32>
    %cst_26 = arith.constant dense<0xFF800000> : vector<8xf32>
    %61 = vector.multi_reduction <maximumf>, %60, %cst_26 [1] : vector<8x8xf32> to vector<8xf32>
    %62 = vector.shape_cast %61 : vector<8xf32> to vector<8x1xf32>
    %63 = vector.broadcast %62 : vector<8x1xf32> to vector<8x8xf32>
    %64 = arith.subf %60, %63 : vector<8x8xf32>
    %65 = math.exp %64 : vector<8x8xf32>
    %cst_27 = arith.constant dense<0.000000e+00> : vector<8xf32>
    %66 = vector.multi_reduction <add>, %65, %cst_27 [1] : vector<8x8xf32> to vector<8xf32>
    %67 = vector.shape_cast %66 : vector<8xf32> to vector<8x1xf32>
    %68 = tpu.reciprocal %67 {approx = true} : vector<8x1xf32> -> vector<8x1xf32>
    %69 = vector.broadcast %68 : vector<8x1xf32> to vector<8x8xf32>
    %70 = arith.mulf %65, %69 : vector<8x8xf32>
    %cst_28 = arith.constant dense<0.000000e+00> : vector<8x8xf32>
    %71 = tpu.matmul %70, %58, %cst_28 {dimension_numbers = #tpu.dot_dimension_numbers<[1], [0], [0], [1], [0, 0, 1, 1], [], []>} : vector<8x8xf32>, vector<8x8xf32>, vector<8x8xf32> -> vector<8x8xf32>
    %c8 = arith.constant 8 : index
    %c0_29 = arith.constant 0 : index
    %72 = vector.load %arg6[%c8, %c0_29] : memref<32x32xf32, #tpu.memory_space<vmem>>, vector<8x32xf32>
    %cst_30 = arith.constant dense<0.000000e+00> : vector<8x32xf32>
    %73 = tpu.matmul %71, %72, %cst_30 {dimension_numbers = #tpu.dot_dimension_numbers<[1], [0], [0], [1], [0, 0, 1, 1], [], []>} : vector<8x8xf32>, vector<8x32xf32>, vector<8x32xf32> -> vector<8x32xf32>
    %74 = arith.addf %55, %73 : vector<8x32xf32>
    %75 = vector.extract_strided_slice %31 {offsets = [0, 16], sizes = [8, 8], strides = [1, 1]} : vector<8x32xf32> to vector<8x8xf32>
    %76 = vector.extract_strided_slice %32 {offsets = [0, 16], sizes = [8, 8], strides = [1, 1]} : vector<8x32xf32> to vector<8x8xf32>
    %77 = vector.extract_strided_slice %33 {offsets = [0, 16], sizes = [8, 8], strides = [1, 1]} : vector<8x32xf32> to vector<8x8xf32>
    %78 = tpu.transpose %76, [1, 0] : vector<8x8xf32> -> vector<8x8xf32>
    %cst_31 = arith.constant dense<0.000000e+00> : vector<8x8xf32>
    %79 = tpu.matmul %75, %78, %cst_31 {dimension_numbers = #tpu.dot_dimension_numbers<[1], [0], [0], [1], [0, 0, 1, 1], [], []>} : vector<8x8xf32>, vector<8x8xf32>, vector<8x8xf32> -> vector<8x8xf32>
    %cst_32 = arith.constant dense<0xFF800000> : vector<8xf32>
    %80 = vector.multi_reduction <maximumf>, %79, %cst_32 [1] : vector<8x8xf32> to vector<8xf32>
    %81 = vector.shape_cast %80 : vector<8xf32> to vector<8x1xf32>
    %82 = vector.broadcast %81 : vector<8x1xf32> to vector<8x8xf32>
    %83 = arith.subf %79, %82 : vector<8x8xf32>
    %84 = math.exp %83 : vector<8x8xf32>
    %cst_33 = arith.constant dense<0.000000e+00> : vector<8xf32>
    %85 = vector.multi_reduction <add>, %84, %cst_33 [1] : vector<8x8xf32> to vector<8xf32>
    %86 = vector.shape_cast %85 : vector<8xf32> to vector<8x1xf32>
    %87 = tpu.reciprocal %86 {approx = true} : vector<8x1xf32> -> vector<8x1xf32>
    %88 = vector.broadcast %87 : vector<8x1xf32> to vector<8x8xf32>
    %89 = arith.mulf %84, %88 : vector<8x8xf32>
    %cst_34 = arith.constant dense<0.000000e+00> : vector<8x8xf32>
    %90 = tpu.matmul %89, %77, %cst_34 {dimension_numbers = #tpu.dot_dimension_numbers<[1], [0], [0], [1], [0, 0, 1, 1], [], []>} : vector<8x8xf32>, vector<8x8xf32>, vector<8x8xf32> -> vector<8x8xf32>
    %c16 = arith.constant 16 : index
    %c0_35 = arith.constant 0 : index
    %91 = vector.load %arg6[%c16, %c0_35] : memref<32x32xf32, #tpu.memory_space<vmem>>, vector<8x32xf32>
    %cst_36 = arith.constant dense<0.000000e+00> : vector<8x32xf32>
    %92 = tpu.matmul %90, %91, %cst_36 {dimension_numbers = #tpu.dot_dimension_numbers<[1], [0], [0], [1], [0, 0, 1, 1], [], []>} : vector<8x8xf32>, vector<8x32xf32>, vector<8x32xf32> -> vector<8x32xf32>
    %93 = arith.addf %74, %92 : vector<8x32xf32>
    %94 = vector.extract_strided_slice %31 {offsets = [0, 24], sizes = [8, 8], strides = [1, 1]} : vector<8x32xf32> to vector<8x8xf32>
    %95 = vector.extract_strided_slice %32 {offsets = [0, 24], sizes = [8, 8], strides = [1, 1]} : vector<8x32xf32> to vector<8x8xf32>
    %96 = vector.extract_strided_slice %33 {offsets = [0, 24], sizes = [8, 8], strides = [1, 1]} : vector<8x32xf32> to vector<8x8xf32>
    %97 = tpu.transpose %95, [1, 0] : vector<8x8xf32> -> vector<8x8xf32>
    %cst_37 = arith.constant dense<0.000000e+00> : vector<8x8xf32>
    %98 = tpu.matmul %94, %97, %cst_37 {dimension_numbers = #tpu.dot_dimension_numbers<[1], [0], [0], [1], [0, 0, 1, 1], [], []>} : vector<8x8xf32>, vector<8x8xf32>, vector<8x8xf32> -> vector<8x8xf32>
    %cst_38 = arith.constant dense<0xFF800000> : vector<8xf32>
    %99 = vector.multi_reduction <maximumf>, %98, %cst_38 [1] : vector<8x8xf32> to vector<8xf32>
    %100 = vector.shape_cast %99 : vector<8xf32> to vector<8x1xf32>
    %101 = vector.broadcast %100 : vector<8x1xf32> to vector<8x8xf32>
    %102 = arith.subf %98, %101 : vector<8x8xf32>
    %103 = math.exp %102 : vector<8x8xf32>
    %cst_39 = arith.constant dense<0.000000e+00> : vector<8xf32>
    %104 = vector.multi_reduction <add>, %103, %cst_39 [1] : vector<8x8xf32> to vector<8xf32>
    %105 = vector.shape_cast %104 : vector<8xf32> to vector<8x1xf32>
    %106 = tpu.reciprocal %105 {approx = true} : vector<8x1xf32> -> vector<8x1xf32>
    %107 = vector.broadcast %106 : vector<8x1xf32> to vector<8x8xf32>
    %108 = arith.mulf %103, %107 : vector<8x8xf32>
    %cst_40 = arith.constant dense<0.000000e+00> : vector<8x8xf32>
    %109 = tpu.matmul %108, %96, %cst_40 {dimension_numbers = #tpu.dot_dimension_numbers<[1], [0], [0], [1], [0, 0, 1, 1], [], []>} : vector<8x8xf32>, vector<8x8xf32>, vector<8x8xf32> -> vector<8x8xf32>
    %c24 = arith.constant 24 : index
    %c0_41 = arith.constant 0 : index
    %110 = vector.load %arg6[%c24, %c0_41] : memref<32x32xf32, #tpu.memory_space<vmem>>, vector<8x32xf32>
    %cst_42 = arith.constant dense<0.000000e+00> : vector<8x32xf32>
    %111 = tpu.matmul %109, %110, %cst_42 {dimension_numbers = #tpu.dot_dimension_numbers<[1], [0], [0], [1], [0, 0, 1, 1], [], []>} : vector<8x8xf32>, vector<8x32xf32>, vector<8x32xf32> -> vector<8x32xf32>
    %112 = arith.addf %93, %111 : vector<8x32xf32>
    %c0_43 = arith.constant 0 : index
    %c0_44 = arith.constant 0 : index
    %113 = vector.load %arg8[%c0_43, %c0_44] : memref<1x32xf32, #tpu.memory_space<vmem>>, vector<1x32xf32>
    %c0_45 = arith.constant 0 : index
    %c0_46 = arith.constant 0 : index
    %114 = vector.load %arg9[%c0_45, %c0_46] : memref<1x32xf32, #tpu.memory_space<vmem>>, vector<1x32xf32>
    %cst_47 = arith.constant dense<0.000000e+00> : vector<8xf32>
    %115 = vector.multi_reduction <add>, %112, %cst_47 [1] : vector<8x32xf32> to vector<8xf32>
    %116 = vector.shape_cast %115 : vector<8xf32> to vector<8x1xf32>
    %cst_48 = arith.constant 3.200000e+01 : f32
    %117 = vector.broadcast %cst_48 : f32 to vector<8x1xf32>
    %118 = arith.divf %116, %117 : vector<8x1xf32>
    %119 = vector.broadcast %118 : vector<8x1xf32> to vector<8x32xf32>
    %120 = arith.subf %112, %119 : vector<8x32xf32>
    %121 = arith.mulf %120, %120 : vector<8x32xf32>
    %cst_49 = arith.constant dense<0.000000e+00> : vector<8xf32>
    %122 = vector.multi_reduction <add>, %121, %cst_49 [1] : vector<8x32xf32> to vector<8xf32>
    %123 = vector.shape_cast %122 : vector<8xf32> to vector<8x1xf32>
    %cst_50 = arith.constant 3.200000e+01 : f32
    %124 = vector.broadcast %cst_50 : f32 to vector<8x1xf32>
    %125 = arith.divf %123, %124 : vector<8x1xf32>
    %cst_51 = arith.constant 9.99999974E-6 : f32
    %126 = vector.broadcast %cst_51 : f32 to vector<8x1xf32>
    %127 = arith.addf %125, %126 : vector<8x1xf32>
    %128 = math.rsqrt %127 : vector<8x1xf32>
    %129 = vector.broadcast %128 : vector<8x1xf32> to vector<8x32xf32>
    %130 = arith.mulf %120, %129 : vector<8x32xf32>
    %131 = vector.broadcast %113 : vector<1x32xf32> to vector<8x32xf32>
    %132 = arith.mulf %130, %131 : vector<8x32xf32>
    %133 = vector.broadcast %114 : vector<1x32xf32> to vector<8x32xf32>
    %134 = arith.addf %132, %133 : vector<8x32xf32>
    %c0_52 = arith.constant 0 : index
    %c0_53 = arith.constant 0 : index
    %135 = vector.load %arg10[%c0_52, %c0_53] : memref<32x128xf32, #tpu.memory_space<vmem>>, vector<32x128xf32>
    %cst_54 = arith.constant dense<0.000000e+00> : vector<8x128xf32>
    %136 = tpu.matmul %134, %135, %cst_54 {dimension_numbers = #tpu.dot_dimension_numbers<[1], [0], [0], [1], [0, 0, 1, 1], [], []>} : vector<8x32xf32>, vector<32x128xf32>, vector<8x128xf32> -> vector<8x128xf32>
    %c0_55 = arith.constant 0 : index
    %c0_56 = arith.constant 0 : index
    %137 = vector.load %arg11[%c0_55, %c0_56] : memref<1x128xf32, #tpu.memory_space<vmem>>, vector<1x128xf32>
    %138 = vector.broadcast %137 : vector<1x128xf32> to vector<8x128xf32>
    %139 = arith.addf %136, %138 : vector<8x128xf32>
    %cst_57 = arith.constant 5.000000e-01 : f32
    %140 = vector.broadcast %cst_57 : f32 to vector<8x128xf32>
    %141 = arith.mulf %140, %139 : vector<8x128xf32>
    %cst_58 = arith.constant 4.471500e-02 : f32
    %142 = vector.broadcast %cst_58 : f32 to vector<8x128xf32>
    %143 = arith.mulf %142, %139 : vector<8x128xf32>
    %144 = arith.mulf %143, %139 : vector<8x128xf32>
    %145 = arith.mulf %144, %139 : vector<8x128xf32>
    %146 = arith.addf %139, %145 : vector<8x128xf32>
    %cst_59 = arith.constant 0.797884583 : f32
    %147 = vector.broadcast %cst_59 : f32 to vector<8x128xf32>
    %148 = arith.mulf %147, %146 : vector<8x128xf32>
    %149 = math.tanh %148 : vector<8x128xf32>
    %cst_60 = arith.constant 1.000000e+00 : f32
    %150 = vector.broadcast %cst_60 : f32 to vector<8x128xf32>
    %151 = arith.addf %150, %149 : vector<8x128xf32>
    %152 = arith.mulf %141, %151 : vector<8x128xf32>
    %c0_61 = arith.constant 0 : index
    %c0_62 = arith.constant 0 : index
    %153 = vector.load %arg12[%c0_61, %c0_62] : memref<128x32xf32, #tpu.memory_space<vmem>>, vector<128x32xf32>
    %cst_63 = arith.constant dense<0.000000e+00> : vector<8x32xf32>
    %154 = tpu.matmul %152, %153, %cst_63 {dimension_numbers = #tpu.dot_dimension_numbers<[1], [0], [0], [1], [0, 0, 1, 1], [], []>} : vector<8x128xf32>, vector<128x32xf32>, vector<8x32xf32> -> vector<8x32xf32>
    %c0_64 = arith.constant 0 : index
    %c0_65 = arith.constant 0 : index
    %155 = vector.load %arg13[%c0_64, %c0_65] : memref<1x32xf32, #tpu.memory_space<vmem>>, vector<1x32xf32>
    %156 = vector.broadcast %155 : vector<1x32xf32> to vector<8x32xf32>
    %157 = arith.addf %154, %156 : vector<8x32xf32>
    %158 = arith.addf %112, %157 : vector<8x32xf32>
    %c0_66 = arith.constant 0 : index
    %c0_67 = arith.constant 0 : index
    %c0_68 = arith.constant 0 : index
    %159 = vector.load %arg14[%c0_66, %c0_67, %c0_68] : memref<1x8x32xf32, #tpu.memory_space<vmem>>, vector<1x8x32xf32>
    %160 = vector.shape_cast %159 : vector<1x8x32xf32> to vector<8x32xf32>
    %161 = vector.shape_cast %158 : vector<8x32xf32> to vector<1x8x32xf32>
    tpu.vector_store %arg14[%c0_66, %c0_67, %c0_68], %161 {strides = array<i32>} : memref<1x8x32xf32, #tpu.memory_space<vmem>>, vector<1x8x32xf32>,
    return
  }
  func.func @transform_0(%arg0: i32) -> (i32, i32, i32) {
    %c0_i32 = arith.constant 0 : i32
    %c0_i32_0 = arith.constant 0 : i32
    %c0_i32_1 = arith.constant 0 : i32
    return %arg0, %c0_i32, %c0_i32_0 : i32, i32, i32
  }
  func.func @transform_1(%arg0: i32) -> (i32, i32) {
    %c0_i32 = arith.constant 0 : i32
    %c0_i32_0 = arith.constant 0 : i32
    %c0_i32_1 = arith.constant 0 : i32
    return %c0_i32, %c0_i32_0 : i32, i32
  }
  func.func @transform_2(%arg0: i32) -> (i32, i32) {
    %c0_i32 = arith.constant 0 : i32
    %c0_i32_0 = arith.constant 0 : i32
    %c0_i32_1 = arith.constant 0 : i32
    return %c0_i32, %c0_i32_0 : i32, i32
  }
  func.func @transform_3(%arg0: i32) -> (i32, i32) {
    %c0_i32 = arith.constant 0 : i32
    %c0_i32_0 = arith.constant 0 : i32
    %c0_i32_1 = arith.constant 0 : i32
    return %c0_i32, %c0_i32_0 : i32, i32
  }
  func.func @transform_4(%arg0: i32) -> (i32, i32) {
    %c0_i32 = arith.constant 0 : i32
    %c0_i32_0 = arith.constant 0 : i32
    %c0_i32_1 = arith.constant 0 : i32
    return %c0_i32, %c0_i32_0 : i32, i32
  }
  func.func @transform_5(%arg0: i32) -> (i32, i32) {
    %c0_i32 = arith.constant 0 : i32
    %c0_i32_0 = arith.constant 0 : i32
    %c0_i32_1 = arith.constant 0 : i32
    return %c0_i32, %c0_i32_0 : i32, i32
  }
  func.func @transform_6(%arg0: i32) -> (i32, i32) {
    %c0_i32 = arith.constant 0 : i32
    %c0_i32_0 = arith.constant 0 : i32
    %c0_i32_1 = arith.constant 0 : i32
    return %c0_i32, %c0_i32_0 : i32, i32
  }
  func.func @transform_7(%arg0: i32) -> (i32, i32) {
    %c0_i32 = arith.constant 0 : i32
    %c0_i32_0 = arith.constant 0 : i32
    %c0_i32_1 = arith.constant 0 : i32
    return %c0_i32, %c0_i32_0 : i32, i32
  }
  func.func @transform_8(%arg0: i32) -> (i32, i32) {
    %c0_i32 = arith.constant 0 : i32
    %c0_i32_0 = arith.constant 0 : i32
    %c0_i32_1 = arith.constant 0 : i32
    return %c0_i32, %c0_i32_0 : i32, i32
  }
  func.func @transform_9(%arg0: i32) -> (i32, i32) {
    %c0_i32 = arith.constant 0 : i32
    %c0_i32_0 = arith.constant 0 : i32
    %c0_i32_1 = arith.constant 0 : i32
    return %c0_i32, %c0_i32_0 : i32, i32
  }
  func.func @transform_10(%arg0: i32) -> (i32, i32) {
    %c0_i32 = arith.constant 0 : i32
    %c0_i32_0 = arith.constant 0 : i32
    %c0_i32_1 = arith.constant 0 : i32
    return %c0_i32, %c0_i32_0 : i32, i32
  }
  func.func @transform_11(%arg0: i32) -> (i32, i32) {
    %c0_i32 = arith.constant 0 : i32
    %c0_i32_0 = arith.constant 0 : i32
    %c0_i32_1 = arith.constant 0 : i32
    return %c0_i32, %c0_i32_0 : i32, i32
  }
  func.func @transform_12(%arg0: i32) -> (i32, i32) {
    %c0_i32 = arith.constant 0 : i32
    %c0_i32_0 = arith.constant 0 : i32
    %c0_i32_1 = arith.constant 0 : i32
    return %c0_i32, %c0_i32_0 : i32, i32
  }
  func.func @transform_13(%arg0: i32) -> (i32, i32, i32) {
    %c0_i32 = arith.constant 0 : i32
    %c0_i32_0 = arith.constant 0 : i32
    %c0_i32_1 = arith.constant 0 : i32
    return %arg0, %c0_i32, %c0_i32_0 : i32, i32, i32
  }
}

</mosaic_0001>

<llo_original>
// kernel: tpu_custom_call.1
$region0: #{tpu_custom_call.1}
  #allocation0 [shape = 'u32[]', space=smem, size = 0x4, offset = 0x4, fixed_abs, tag = 'smem constant byte address 0x4 - core index']
  #allocation1 [shape = 'u32[144,128]{1,0:T(1,128)}', space=vmem, size = 0x12000, scoped, tag = 'internal scratch']
  %s0 = inlined_call_operand.vmem [shape: f32[2,8,32], index: 0, kind: input, shape index: {}]
  %s1 = inlined_call_operand.vmem [shape: f32[1,32], index: 1, kind: input, shape index: {}]
  %s2 = inlined_call_operand.vmem [shape: f32[1,32], index: 2, kind: input, shape index: {}]
  %s3 = inlined_call_operand.vmem [shape: f32[32,96], index: 3, kind: input, shape index: {}]
  %s4 = inlined_call_operand.vmem [shape: f32[1,96], index: 4, kind: input, shape index: {}]
  %s5 = inlined_call_operand.vmem [shape: f32[32,32], index: 5, kind: input, shape index: {}]
  %s6 = inlined_call_operand.vmem [shape: f32[1,32], index: 6, kind: input, shape index: {}]
  %s7 = inlined_call_operand.vmem [shape: f32[1,32], index: 7, kind: input, shape index: {}]
  %s8 = inlined_call_operand.vmem [shape: f32[1,32], index: 8, kind: input, shape index: {}]
  %s9 = inlined_call_operand.vmem [shape: f32[32,128], index: 9, kind: input, shape index: {}]
  %s10 = inlined_call_operand.vmem [shape: f32[1,128], index: 10, kind: input, shape index: {}]
  %s11 = inlined_call_operand.vmem [shape: f32[128,32], index: 11, kind: input, shape index: {}]
  %s12 = inlined_call_operand.vmem [shape: f32[1,32], index: 12, kind: input, shape index: {}]
  %s13 = inlined_call_operand.hbm [shape: f32[2,8,32], index: 13, kind: output, shape index: {}]
  %s14 = sld [smem:[#allocation0]]
  $region85: #{tpu_custom_call.1} parent=0
    _
  %s16 = ssub.s32 1, %s14
  %s17 = scalar_select 0, %s16, %s14
  $region1: #{tpu_custom_call.1} parent=0
    #allocation2 [shape = 'u8[8192]{0}', space=vmem, size = 0x2000, scoped, tag = 'output window, operand 0']
    #allocation3 [shape = 's32[2]{0}', space=sflag, size = 0x8, scoped, tag = 'scoped memory for tpu_custom_call.1']
    %18 = vsyncpa [#allocation3], 0
    %s19 = scalar_lea.sflag [#allocation3], 1
    %20 = vsyncpa %s19, 0
    loop: start=0, step=1, limit=4
    $region2: #{tpu_custom_call.1} parent=1 // loop_pre_header
      _
    $region3: #{tpu_custom_call.1} parent=1 // loop_header
      %s22 = sphi 0, %s26
      %p23 = scmp.ge.s32.totalorder %s22, 4
      %s32 = sphi 0, %s34
      %s35 = sphi 0, %s32
      %s36 = sphi 0, %s35
      %s52 = sphi 0, %s36
      %s56 = sphi 0, %s56
      %s58 = sphi 0, %s56
      %s59 = sphi 0, %s58
      %s73 = sphi 0, %s59
      %s77 = sphi 0, %s77
      %s79 = sphi 0, %s77
      %s80 = sphi 0, %s79
      %s94 = sphi 0, %s80
      %s98 = sphi 0, %s98
      %s100 = sphi 0, %s98
      %s101 = sphi 0, %s100
      %s115 = sphi 0, %s101
      %s119 = sphi 0, %s119
      %s121 = sphi 0, %s119
      %s122 = sphi 0, %s121
      %s136 = sphi 0, %s122
      %s140 = sphi 0, %s140
      %s142 = sphi 0, %s140
      %s143 = sphi 0, %s142
      %s157 = sphi 0, %s143
      %s161 = sphi 0, %s161
      %s163 = sphi 0, %s161
      %s164 = sphi 0, %s163
      %s178 = sphi 0, %s164
      %s182 = sphi 0, %s182
      %s184 = sphi 0, %s182
      %s185 = sphi 0, %s184
      %s199 = sphi 0, %s185
      %s203 = sphi 0, %s203
      %s205 = sphi 0, %s203
      %s206 = sphi 0, %s205
      %s220 = sphi 0, %s206
      %s224 = sphi 0, %s224
      %s226 = sphi 0, %s224
      %s227 = sphi 0, %s226
      %s241 = sphi 0, %s227
      %s245 = sphi 0, %s245
      %s247 = sphi 0, %s245
      %s248 = sphi 0, %s247
      %s262 = sphi 0, %s248
      %s266 = sphi 0, %s266
      %s268 = sphi 0, %s266
      %s269 = sphi 0, %s268
      %s283 = sphi 0, %s269
      %s287 = sphi 0, %s287
      %s289 = sphi 0, %s287
      %s290 = sphi 0, %s289
      %s304 = sphi 0, %s290
      %s310 = sphi 0, %s312
      %s313 = sphi 0, %s310
      %s314 = sphi 0, %s313
      %s330 = sphi 0, %s314
    $region4: #{tpu_custom_call.1} parent=1 // loop_header_branch
      %25 = sbr.rel (%p23) target = $region8
    $region5: #{tpu_custom_call.1} parent=1 // loop_body
      %s27 = ssub.s32 %s22, 1
      %s28 = ssub.s32 %s22, 2
      %s29 = sadd.s32 %s22, 1
      %s30 = ssub.s32 %s22, %s29
      %p31 = scmp.eq.s32.totalorder %s30, 0
      %s33 = sadd.s32 %s32, 1
      %s34 = scalar_select %p31, %s32, %s33
      %p37 = pneg %p31
      %p38 = scmp.eq.s32.totalorder %s22, 1
      %p39 = por %p37, %p38
      %p40 = scmp.ne.s32.totalorder %s32, %s35
      %p41 = scmp.eq.s32.totalorder %s22, 0
      %p42 = por %p40, %p41
      %p43 = scmp.ne.s32.totalorder %s32, %s35
      %p44 = scmp.eq.s32.totalorder %s27, 1
      %p45 = por %p43, %p44
      %p46 = scmp.ne.s32.totalorder %s35, %s36
      %p47 = scmp.eq.s32.totalorder %s27, 0
      %p48 = por %p46, %p47
      %p49 = scmp.ne.s32.totalorder %s35, %s36
      %p50 = scmp.eq.s32.totalorder %s28, 1
      %p51 = por %p49, %p50
      %p53 = scmp.ne.s32.totalorder %s36, %s52
      %p54 = scmp.eq.s32.totalorder %s28, 0
      %p55 = por %p53, %p54
      %s57 = sadd.s32 %s56, 1
      %p60 = scmp.eq.s32.totalorder %s22, 1
      %p61 = scmp.ne.s32.totalorder %s56, %s58
      %p62 = scmp.eq.s32.totalorder %s22, 0
      %p63 = por %p61, %p62
      %p64 = scmp.ne.s32.totalorder %s56, %s58
      %p65 = scmp.eq.s32.totalorder %s27, 1
      %p66 = por %p64, %p65
      %p67 = scmp.ne.s32.totalorder %s58, %s59
      %p68 = scmp.eq.s32.totalorder %s27, 0
      %p69 = por %p67, %p68
      %p70 = scmp.ne.s32.totalorder %s58, %s59
      %p71 = scmp.eq.s32.totalorder %s28, 1
      %p72 = por %p70, %p71
      %p74 = scmp.ne.s32.totalorder %s59, %s73
      %p75 = scmp.eq.s32.totalorder %s28, 0
      %p76 = por %p74, %p75
      %s78 = sadd.s32 %s77, 1
      %p81 = scmp.eq.s32.totalorder %s22, 1
      %p82 = scmp.ne.s32.totalorder %s77, %s79
      %p83 = scmp.eq.s32.totalorder %s22, 0
      %p84 = por %p82, %p83
      %p85 = scmp.ne.s32.totalorder %s77, %s79
      %p86 = scmp.eq.s32.totalorder %s27, 1
      %p87 = por %p85, %p86
      %p88 = scmp.ne.s32.totalorder %s79, %s80
      %p89 = scmp.eq.s32.totalorder %s27, 0
      %p90 = por %p88, %p89
      %p91 = scmp.ne.s32.totalorder %s79, %s80
      %p92 = scmp.eq.s32.totalorder %s28, 1
      %p93 = por %p91, %p92
      %p95 = scmp.ne.s32.totalorder %s80, %s94
      %p96 = scmp.eq.s32.totalorder %s28, 0
      %p97 = por %p95, %p96
      %s99 = sadd.s32 %s98, 1
      %p102 = scmp.eq.s32.totalorder %s22, 1
      %p103 = scmp.ne.s32.totalorder %s98, %s100
      %p104 = scmp.eq.s32.totalorder %s22, 0
      %p105 = por %p103, %p104
      %p106 = scmp.ne.s32.totalorder %s98, %s100
      %p107 = scmp.eq.s32.totalorder %s27, 1
      %p108 = por %p106, %p107
      %p109 = scmp.ne.s32.totalorder %s100, %s101
      %p110 = scmp.eq.s32.totalorder %s27, 0
      %p111 = por %p109, %p110
      %p112 = scmp.ne.s32.totalorder %s100, %s101
      %p113 = scmp.eq.s32.totalorder %s28, 1
      %p114 = por %p112, %p113
      %p116 = scmp.ne.s32.totalorder %s101, %s115
      %p117 = scmp.eq.s32.totalorder %s28, 0
      %p118 = por %p116, %p117
      %s120 = sadd.s32 %s119, 1
      %p123 = scmp.eq.s32.totalorder %s22, 1
      %p124 = scmp.ne.s32.totalorder %s119, %s121
      %p125 = scmp.eq.s32.totalorder %s22, 0
      %p126 = por %p124, %p125
      %p127 = scmp.ne.s32.totalorder %s119, %s121
      %p128 = scmp.eq.s32.totalorder %s27, 1
      %p129 = por %p127, %p128
      %p130 = scmp.ne.s32.totalorder %s121, %s122
      %p131 = scmp.eq.s32.totalorder %s27, 0
      %p132 = por %p130, %p131
      %p133 = scmp.ne.s32.totalorder %s121, %s122
      %p134 = scmp.eq.s32.totalorder %s28, 1
      %p135 = por %p133, %p134
      %p137 = scmp.ne.s32.totalorder %s122, %s136
      %p138 = scmp.eq.s32.totalorder %s28, 0
      %p139 = por %p137, %p138
      %s141 = sadd.s32 %s140, 1
      %p144 = scmp.eq.s32.totalorder %s22, 1
      %p145 = scmp.ne.s32.totalorder %s140, %s142
      %p146 = scmp.eq.s32.totalorder %s22, 0
      %p147 = por %p145, %p146
      %p148 = scmp.ne.s32.totalorder %s140, %s142
      %p149 = scmp.eq.s32.totalorder %s27, 1
      %p150 = por %p148, %p149
      %p151 = scmp.ne.s32.totalorder %s142, %s143
      %p152 = scmp.eq.s32.totalorder %s27, 0
      %p153 = por %p151, %p152
      %p154 = scmp.ne.s32.totalorder %s142, %s143
      %p155 = scmp.eq.s32.totalorder %s28, 1
      %p156 = por %p154, %p155
      %p158 = scmp.ne.s32.totalorder %s143, %s157
      %p159 = scmp.eq.s32.totalorder %s28, 0
      %p160 = por %p158, %p159
      %s162 = sadd.s32 %s161, 1
      %p165 = scmp.eq.s32.totalorder %s22, 1
      %p166 = scmp.ne.s32.totalorder %s161, %s163
      %p167 = scmp.eq.s32.totalorder %s22, 0
      %p168 = por %p166, %p167
      %p169 = scmp.ne.s32.totalorder %s161, %s163
      %p170 = scmp.eq.s32.totalorder %s27, 1
      %p171 = por %p169, %p170
      %p172 = scmp.ne.s32.totalorder %s163, %s164
      %p173 = scmp.eq.s32.totalorder %s27, 0
      %p174 = por %p172, %p173
      %p175 = scmp.ne.s32.totalorder %s163, %s164
      %p176 = scmp.eq.s32.totalorder %s28, 1
      %p177 = por %p175, %p176
      %p179 = scmp.ne.s32.totalorder %s164, %s178
      %p180 = scmp.eq.s32.totalorder %s28, 0
      %p181 = por %p179, %p180
      %s183 = sadd.s32 %s182, 1
      %p186 = scmp.eq.s32.totalorder %s22, 1
      %p187 = scmp.ne.s32.totalorder %s182, %s184
      %p188 = scmp.eq.s32.totalorder %s22, 0
      %p189 = por %p187, %p188
      %p190 = scmp.ne.s32.totalorder %s182, %s184
      %p191 = scmp.eq.s32.totalorder %s27, 1
      %p192 = por %p190, %p191
      %p193 = scmp.ne.s32.totalorder %s184, %s185
      %p194 = scmp.eq.s32.totalorder %s27, 0
      %p195 = por %p193, %p194
      %p196 = scmp.ne.s32.totalorder %s184, %s185
      %p197 = scmp.eq.s32.totalorder %s28, 1
      %p198 = por %p196, %p197
      %p200 = scmp.ne.s32.totalorder %s185, %s199
      %p201 = scmp.eq.s32.totalorder %s28, 0
      %p202 = por %p200, %p201
      %s204 = sadd.s32 %s203, 1
      %p207 = scmp.eq.s32.totalorder %s22, 1
      %p208 = scmp.ne.s32.totalorder %s203, %s205
      %p209 = scmp.eq.s32.totalorder %s22, 0
      %p210 = por %p208, %p209
      %p211 = scmp.ne.s32.totalorder %s203, %s205
      %p212 = scmp.eq.s32.totalorder %s27, 1
      %p213 = por %p211, %p212
      %p214 = scmp.ne.s32.totalorder %s205, %s206
      %p215 = scmp.eq.s32.totalorder %s27, 0
      %p216 = por %p214, %p215
      %p217 = scmp.ne.s32.totalorder %s205, %s206
      %p218 = scmp.eq.s32.totalorder %s28, 1
      %p219 = por %p217, %p218
      %p221 = scmp.ne.s32.totalorder %s206, %s220
      %p222 = scmp.eq.s32.totalorder %s28, 0
      %p223 = por %p221, %p222
      %s225 = sadd.s32 %s224, 1
      %p228 = scmp.eq.s32.totalorder %s22, 1
      %p229 = scmp.ne.s32.totalorder %s224, %s226
      %p230 = scmp.eq.s32.totalorder %s22, 0
      %p231 = por %p229, %p230
      %p232 = scmp.ne.s32.totalorder %s224, %s226
      %p233 = scmp.eq.s32.totalorder %s27, 1
      %p234 = por %p232, %p233
      %p235 = scmp.ne.s32.totalorder %s226, %s227
      %p236 = scmp.eq.s32.totalorder %s27, 0
      %p237 = por %p235, %p236
      %p238 = scmp.ne.s32.totalorder %s226, %s227
      %p239 = scmp.eq.s32.totalorder %s28, 1
      %p240 = por %p238, %p239
      %p242 = scmp.ne.s32.totalorder %s227, %s241
      %p243 = scmp.eq.s32.totalorder %s28, 0
      %p244 = por %p242, %p243
      %s246 = sadd.s32 %s245, 1
      %p249 = scmp.eq.s32.totalorder %s22, 1
      %p250 = scmp.ne.s32.totalorder %s245, %s247
      %p251 = scmp.eq.s32.totalorder %s22, 0
      %p252 = por %p250, %p251
      %p253 = scmp.ne.s32.totalorder %s245, %s247
      %p254 = scmp.eq.s32.totalorder %s27, 1
      %p255 = por %p253, %p254
      %p256 = scmp.ne.s32.totalorder %s247, %s248
      %p257 = scmp.eq.s32.totalorder %s27, 0
      %p258 = por %p256, %p257
      %p259 = scmp.ne.s32.totalorder %s247, %s248
      %p260 = scmp.eq.s32.totalorder %s28, 1
      %p261 = por %p259, %p260
      %p263 = scmp.ne.s32.totalorder %s248, %s262
      %p264 = scmp.eq.s32.totalorder %s28, 0
      %p265 = por %p263, %p264
      %s267 = sadd.s32 %s266, 1
      %p270 = scmp.eq.s32.totalorder %s22, 1
      %p271 = scmp.ne.s32.totalorder %s266, %s268
      %p272 = scmp.eq.s32.totalorder %s22, 0
      %p273 = por %p271, %p272
      %p274 = scmp.ne.s32.totalorder %s266, %s268
      %p275 = scmp.eq.s32.totalorder %s27, 1
      %p276 = por %p274, %p275
      %p277 = scmp.ne.s32.totalorder %s268, %s269
      %p278 = scmp.eq.s32.totalorder %s27, 0
      %p279 = por %p277, %p278
      %p280 = scmp.ne.s32.totalorder %s268, %s269
      %p281 = scmp.eq.s32.totalorder %s28, 1
      %p282 = por %p280, %p281
      %p284 = scmp.ne.s32.totalorder %s269, %s283
      %p285 = scmp.eq.s32.totalorder %s28, 0
      %p286 = por %p284, %p285
      %s288 = sadd.s32 %s287, 1
      %p291 = scmp.eq.s32.totalorder %s22, 1
      %p292 = scmp.ne.s32.totalorder %s287, %s289
      %p293 = scmp.eq.s32.totalorder %s22, 0
      %p294 = por %p292, %p293
      %p295 = scmp.ne.s32.totalorder %s287, %s289
      %p296 = scmp.eq.s32.totalorder %s27, 1
      %p297 = por %p295, %p296
      %p298 = scmp.ne.s32.totalorder %s289, %s290
      %p299 = scmp.eq.s32.totalorder %s27, 0
      %p300 = por %p298, %p299
      %p301 = scmp.ne.s32.totalorder %s289, %s290
      %p302 = scmp.eq.s32.totalorder %s28, 1
      %p303 = por %p301, %p302
      %p305 = scmp.ne.s32.totalorder %s290, %s304
      %p306 = scmp.eq.s32.totalorder %s28, 0
      %p307 = por %p305, %p306
      %s308 = ssub.s32 %s22, %s29
      %p309 = scmp.eq.s32.totalorder %s308, 0
      %s311 = sadd.s32 %s310, 1
      %s312 = scalar_select %p309, %s310, %s311
      %p315 = pneg %p309
      %p316 = scmp.eq.s32.totalorder %s22, 1
      %p317 = por %p315, %p316
      %p318 = scmp.ne.s32.totalorder %s310, %s313
      %p319 = scmp.eq.s32.totalorder %s22, 0
      %p320 = por %p318, %p319
      %p321 = scmp.ne.s32.totalorder %s310, %s313
      %p322 = scmp.eq.s32.totalorder %s27, 1
      %p323 = por %p321, %p322
      %p324 = scmp.ne.s32.totalorder %s313, %s314
      %p325 = scmp.eq.s32.totalorder %s27, 0
      %p326 = por %p324, %p325
      %p327 = scmp.ne.s32.totalorder %s313, %s314
      %p328 = scmp.eq.s32.totalorder %s28, 1
      %p329 = por %p327, %p328
      %p331 = scmp.ne.s32.totalorder %s314, %s330
      %p332 = scmp.eq.s32.totalorder %s28, 0
      %p333 = por %p331, %p332
      %p334 = scmp.le.s32.totalorder 1, %s22
      %p335 = scmp.lt.s32.totalorder %s22, 3
      %p336 = pnand %p334, %p335
      %p337 = pneg %p336
      // Predicated region
      $region9: #{tpu_custom_call.1} parent=5 // pred_check
        _
      $region10: #{tpu_custom_call.1} parent=5 // pred_check_branch
        %339 = sbr.rel (%p336) target = $region12
      $region11: #{tpu_custom_call.1} parent=5 // pred_region
        %s340 = ssub.s32 %s22, 1
        // Predicated region
        $region13: #{tpu_custom_call.1} parent=11 // pred_check
          %p341 = pneg %p69
        $region14: #{tpu_custom_call.1} parent=11 // pred_check_branch
          %343 = sbr.rel (%p341) target = $region16
        $region15: #{tpu_custom_call.1} parent=11 // pred_region
          _
        $region16: #{tpu_custom_call.1} parent=11 // pred_fallthru
          _
        // Predicated region
        $region17: #{tpu_custom_call.1} parent=11 // pred_check
          %p344 = pneg %p90
        $region18: #{tpu_custom_call.1} parent=11 // pred_check_branch
          %346 = sbr.rel (%p344) target = $region20
        $region19: #{tpu_custom_call.1} parent=11 // pred_region
          _
        $region20: #{tpu_custom_call.1} parent=11 // pred_fallthru
          _
        // Predicated region
        $region21: #{tpu_custom_call.1} parent=11 // pred_check
          %p347 = pneg %p111
        $region22: #{tpu_custom_call.1} parent=11 // pred_check_branch
          %349 = sbr.rel (%p347) target = $region24
        $region23: #{tpu_custom_call.1} parent=11 // pred_region
          _
        $region24: #{tpu_custom_call.1} parent=11 // pred_fallthru
          _
        // Predicated region
        $region25: #{tpu_custom_call.1} parent=11 // pred_check
          %p350 = pneg %p132
        $region26: #{tpu_custom_call.1} parent=11 // pred_check_branch
          %352 = sbr.rel (%p350) target = $region28
        $region27: #{tpu_custom_call.1} parent=11 // pred_region
          _
        $region28: #{tpu_custom_call.1} parent=11 // pred_fallthru
          _
        // Predicated region
        $region29: #{tpu_custom_call.1} parent=11 // pred_check
          %p353 = pneg %p153
        $region30: #{tpu_custom_call.1} parent=11 // pred_check_branch
          %355 = sbr.rel (%p353) target = $region32
        $region31: #{tpu_custom_call.1} parent=11 // pred_region
          _
        $region32: #{tpu_custom_call.1} parent=11 // pred_fallthru
          _
        // Predicated region
        $region33: #{tpu_custom_call.1} parent=11 // pred_check
          %p356 = pneg %p174
        $region34: #{tpu_custom_call.1} parent=11 // pred_check_branch
          %358 = sbr.rel (%p356) target = $region36
        $region35: #{tpu_custom_call.1} parent=11 // pred_region
          _
        $region36: #{tpu_custom_call.1} parent=11 // pred_fallthru
          _
        // Predicated region
        $region37: #{tpu_custom_call.1} parent=11 // pred_check
          %p359 = pneg %p195
        $region38: #{tpu_custom_call.1} parent=11 // pred_check_branch
          %361 = sbr.rel (%p359) target = $region40
        $region39: #{tpu_custom_call.1} parent=11 // pred_region
          _
        $region40: #{tpu_custom_call.1} parent=11 // pred_fallthru
          _
        // Predicated region
        $region41: #{tpu_custom_call.1} parent=11 // pred_check
          %p362 = pneg %p216
        $region42: #{tpu_custom_call.1} parent=11 // pred_check_branch
          %364 = sbr.rel (%p362) target = $region44
        $region43: #{tpu_custom_call.1} parent=11 // pred_region
          _
        $region44: #{tpu_custom_call.1} parent=11 // pred_fallthru
          _
        // Predicated region
        $region45: #{tpu_custom_call.1} parent=11 // pred_check
          %p365 = pneg %p237
        $region46: #{tpu_custom_call.1} parent=11 // pred_check_branch
          %367 = sbr.rel (%p365) target = $region48
        $region47: #{tpu_custom_call.1} parent=11 // pred_region
          _
        $region48: #{tpu_custom_call.1} parent=11 // pred_fallthru
          _
        // Predicated region
        $region49: #{tpu_custom_call.1} parent=11 // pred_check
          %p368 = pneg %p258
        $region50: #{tpu_custom_call.1} parent=11 // pred_check_branch
          %370 = sbr.rel (%p368) target = $region52
        $region51: #{tpu_custom_call.1} parent=11 // pred_region
          _
        $region52: #{tpu_custom_call.1} parent=11 // pred_fallthru
          _
        // Predicated region
        $region53: #{tpu_custom_call.1} parent=11 // pred_check
          %p371 = pneg %p279
        $region54: #{tpu_custom_call.1} parent=11 // pred_check_branch
          %373 = sbr.rel (%p371) target = $region56
        $region55: #{tpu_custom_call.1} parent=11 // pred_region
          _
        $region56: #{tpu_custom_call.1} parent=11 // pred_fallthru
          _
        // Predicated region
        $region57: #{tpu_custom_call.1} parent=11 // pred_check
          %p374 = pneg %p300
        $region58: #{tpu_custom_call.1} parent=11 // pred_check_branch
          %376 = sbr.rel (%p374) target = $region60
        $region59: #{tpu_custom_call.1} parent=11 // pred_region
          _
        $region60: #{tpu_custom_call.1} parent=11 // pred_fallthru
          _
      $region12: #{tpu_custom_call.1} parent=5 // pred_fallthru
        _
      %p377 = scmp.lt.s32.totalorder %s22, 2
      // Predicated region
      $region61: #{tpu_custom_call.1} parent=5 // pred_check
        %p378 = pneg %p377
      $region62: #{tpu_custom_call.1} parent=5 // pred_check_branch
        %380 = sbr.rel (%p378) target = $region64
      $region63: #{tpu_custom_call.1} parent=5 // pred_region
        // Predicated region
        $region65: #{tpu_custom_call.1} parent=63 // pred_check
          %p381 = pneg %p42
        $region66: #{tpu_custom_call.1} parent=63 // pred_check_branch
          %383 = sbr.rel (%p381) target = $region68
        $region67: #{tpu_custom_call.1} parent=63 // pred_region
          %p384 = scmp.lt.s32.totalorder %s22, 1
          %s385 = scalar_select %p384, %s22, 1
          %s386 = smul.addr %s385, 8
          %s387 = scalar_lea.vmem %s0, %s386
        $region68: #{tpu_custom_call.1} parent=63 // pred_fallthru
          _
      $region64: #{tpu_custom_call.1} parent=5 // pred_fallthru
        _
      %p388 = scmp.le.s32.totalorder 1, %s22
      %p389 = scmp.lt.s32.totalorder %s22, 3
      %p390 = pnand %p388, %p389
      %p391 = pneg %p390
      // Predicated region
      $region69: #{tpu_custom_call.1} parent=5 // pred_check
        _
      $region70: #{tpu_custom_call.1} parent=5 // pred_check_branch
        %393 = sbr.rel (%p390) target = $region72
      $region71: #{tpu_custom_call.1} parent=5 // pred_region
        %s394 = ssub.s32 %s22, 1
        %p395 = scmp.lt.s32.totalorder %s27, 1
        %s396 = scalar_select %p395, %s27, 1
        %s397 = smul.addr %s396, 8
        %s398 = scalar_lea.vmem %s0, %s397
        %p399 = pneg %p48
        %p400 = pneg %p45
        %p401 = pneg %p69
        %p402 = pneg %p66
        %p403 = pneg %p90
        %p404 = pneg %p87
        %p405 = pneg %p111
        %p406 = pneg %p108
        %p407 = pneg %p132
        %p408 = pneg %p129
        %p409 = pneg %p153
        %p410 = pneg %p150
        %p411 = pneg %p174
        %p412 = pneg %p171
        %p413 = pneg %p195
        %p414 = pneg %p192
        %p415 = pneg %p216
        %p416 = pneg %p213
        %p417 = pneg %p237
        %p418 = pneg %p234
        %p419 = pneg %p258
        %p420 = pneg %p255
        %p421 = pneg %p279
        %p422 = pneg %p276
        %p423 = pneg %p300
        %p424 = pneg %p297
        %p425 = pneg %p326
        %p426 = pneg %p323
        %s427 = sand.u32 %s313, 1
        %s428 = scalar_lea.sflag [#allocation3], %s427
        %s429 = sand.u32 %s313, 1
        %s430 = smul.addr %s429, 8
        %s431 = scalar_lea.vmem [#allocation2], %s430
        %p432 = scmp.lt.s32.totalorder %s27, 1
        %s433 = scalar_select %p432, %s27, 1
        %s434 = smul.addr %s433, 8
        %s435 = scalar_lea.vmem %s0, %s434
        %v436 = vld [vmem:[%s435] sm:$0xff]
        %v437 = vld [vmem:[%s1] sm:$0x1]
        %v438 = vld [vmem:[%s2] sm:$0x1]
        %vm439 = vcmask 261120
        %v440 = vsel %vm439, %v436, 0.0
        %441 = vadd.xlane.f32.xlu0 %v440
        %v442 = vpop.xlane.xlu0 %441
        %v443 = vrcp.pop 32.0
        %v444 = vmul.f32 %v442, %v443
        %v445 = vsub.f32 %v436, %v444
        %v446 = vmul.f32 %v445, %v445
        %v447 = vsel %vm439, %v446, 0.0
        %448 = vadd.xlane.f32.xlu0 %v447
        %v449 = vpop.xlane.xlu0 %448
        %v450 = vmul.f32 %v449, %v443
        %v451 = vadd.f32 %v450, 1e-05
        %v452 = vrsqrt.pop %v451
        %v453 = vmul.f32 %v445, %v452
        %v455 = vlaneseq
        %v456 = vshrl.u32 %v455, 7
        %v457 = vsub.s32 0, %v456
        %v458 = vrot.slane %v437, %v457
        %v460 = vmul.f32 %v453, %v458
        %v462 = vlaneseq
        %v463 = vshrl.u32 %v462, 7
        %v464 = vsub.s32 0, %v463
        %v465 = vrot.slane %v438, %v464
        %v467 = vadd.f32 %v460, %v465
        %v468 = vld [vmem:[%s3] sm:$0xff]
        %v469 = vld [vmem:[%s3 + $0x8] sm:$0xff]
        %v470 = vld [vmem:[%s3 + $0x10] sm:$0xff]
        %v471 = vld [vmem:[%s3 + $0x18] sm:$0xff]
        %v472 = vld [vmem:[%s4] sm:$0x1]
        %v474 = vlaneseq
        %v475 = vshrl.u32 %v474, 7
        %v476 = vsub.s32 0, %v475
        %v477 = vrot.slane %v472, %v476
        %v480 = vsel %vm439, %v467, 0
        %482 = vmatprep.subr.mxu0 0.0
        %483 = vmatpush1.msra.mxu0 %v468
        %484 = vmatprep.subr.mxu0 0.0
        %485 = vmatpush1.msra.mxu0 %v469
        %486 = vmatprep.subr.mxu0 0.0
        %487 = vmatpush1.msra.mxu0 %v470
        %488 = vmatprep.subr.mxu0 0.0
        %489 = vmatpush1.msra.mxu0 %v471
        %490 = vmatprep.subr.mxu0 0.0
        %491 = vmatpush1.msra.mxu0 0.0
        %492 = vmatprep.subr.mxu0 0.0
        %493 = vmatpush1.msra.mxu0 0.0
        %494 = vmatprep.subr.mxu0 0.0
        %495 = vmatpush1.msra.mxu0 0.0
        %496 = vmatprep.subr.mxu0 0.0
        %497 = vmatpush1.msra.mxu0 0.0
        %498 = vmatprep.subr.mxu0 0.0
        %499 = vmatpush1.msra.mxu0 0.0
        %500 = vmatprep.subr.mxu0 0.0
        %501 = vmatpush1.msra.mxu0 0.0
        %502 = vmatprep.subr.mxu0 0.0
        %503 = vmatpush1.msra.mxu0 0.0
        %504 = vmatprep.subr.mxu0 0.0
        %505 = vmatpush1.msra.mxu0 0.0
        %506 = vmatprep.subr.mxu0 0.0
        %507 = vmatpush1.msra.mxu0 0.0
        %508 = vmatprep.subr.mxu0 0.0
        %509 = vmatpush1.msra.mxu0 0.0
        %510 = vmatprep.subr.mxu0 0.0
        %511 = vmatpush1.msra.mxu0 0.0
        %512 = vmatprep.subr.mxu0 0.0
        %513 = vmatpush1.msra.mxu0 0.0
        %514 = vmatprep.subr.mxu0 0.0
        %515 = vmatpush1.msra.mxu0 0.0
        %516 = vmatprep.subr.mxu0 0.0
        %517 = vmatpush1.msra.mxu0 0.0
        %518 = vmatprep.subr.mxu0 0.0
        %519 = vmatpush1.msra.mxu0 0.0
        %520 = vmatprep.subr.mxu0 0.0
        %521 = vmatpush1.msra.mxu0 0.0
        %522 = vmatprep.subr.mxu0 0.0
        %523 = vmatpush1.msra.mxu0 0.0
        %524 = vmatprep.subr.mxu0 0.0
        %525 = vmatpush1.msra.mxu0 0.0
        %526 = vmatprep.subr.mxu0 0.0
        %527 = vmatpush1.msra.mxu0 0.0
        %528 = vmatprep.subr.mxu0 0.0
        %529 = vmatpush1.msra.mxu0 0.0
        %530 = vmatprep.subr.mxu0 0.0
        %531 = vmatpush1.msra.mxu0 0.0
        %532 = vmatprep.subr.mxu0 0.0
        %533 = vmatpush1.msra.mxu0 0.0
        %534 = vmatprep.subr.mxu0 0.0
        %535 = vmatpush1.msra.mxu0 0.0
        %536 = vmatprep.subr.mxu0 0.0
        %537 = vmatpush1.msra.mxu0 0.0
        %538 = vmatprep.subr.mxu0 0.0
        %539 = vmatpush1.msra.mxu0 0.0
        %540 = vmatprep.subr.mxu0 0.0
        %541 = vmatpush1.msra.mxu0 0.0
        %542 = vmatprep.subr.mxu0 0.0
        %543 = vmatpush1.msra.mxu0 0.0
        %544 = vmatprep.subr.mxu0 0.0
        %545 = vmatpush1.msra.mxu0 0.0
        %546 = vmatprep.mubr.f32.mxu0 0.0
        %547 = vmatmul.mubr.f32.gmra.mrb[0].mxu0 %v480
        %v548 = vpop.f32.mrb[0].mxu0
        %v549 = vadd.f32 %v477, %v548
        %v550 = vpop.f32.mrb[0].mxu0
        %551 = vdwg.mxu0
        %v552 = vmul.f32 %v549, 0.35355338
        %v553 = vld [vmem:[%s6] sm:$0x1]
        %v555 = vlaneseq
        %v556 = vshrl.u32 %v555, 7
        %v557 = vsub.s32 0, %v556
        %v558 = vrot.slane %v553, %v557
        %v560 = vadd.f32 %v436, %v558
        %562 = vrot.lane.b32.xlu0 %v549, 96
        %v563 = vpop.permute.xlu0 %562
        %vm564 = vcmask 64512
        %v566 = vsel %vm564, %v552, 0
        %v568 = vsel %vm564, %v563, 0
        %570 = vmatprep.subr.mxu0 0.0
        %571 = vmatpush1.xpose.msra.mxu0 %v568
        %572 = vmatprep.subr.mxu0 0.0
        %573 = vmatpush1.xpose.msra.mxu0 0.0
        %574 = vmatprep.subr.mxu0 0.0
        %575 = vmatpush1.xpose.msra.mxu0 0.0
        %576 = vmatprep.subr.mxu0 0.0
        %577 = vmatpush1.xpose.msra.mxu0 0.0
        %578 = vmatprep.subr.mxu0 0.0
        %579 = vmatpush1.xpose.msra.mxu0 0.0
        %580 = vmatprep.subr.mxu0 0.0
        %581 = vmatpush1.xpose.msra.mxu0 0.0
        %582 = vmatprep.subr.mxu0 0.0
        %583 = vmatpush1.xpose.msra.mxu0 0.0
        %584 = vmatprep.subr.mxu0 0.0
        %585 = vmatpush1.xpose.msra.mxu0 0.0
        %586 = vmatprep.subr.mxu0 0.0
        %587 = vmatpush1.xpose.msra.mxu0 0.0
        %588 = vmatprep.subr.mxu0 0.0
        %589 = vmatpush1.xpose.msra.mxu0 0.0
        %590 = vmatprep.subr.mxu0 0.0
        %591 = vmatpush1.xpose.msra.mxu0 0.0
        %592 = vmatprep.subr.mxu0 0.0
        %593 = vmatpush1.xpose.msra.mxu0 0.0
        %594 = vmatprep.subr.mxu0 0.0
        %595 = vmatpush1.xpose.msra.mxu0 0.0
        %596 = vmatprep.subr.mxu0 0.0
        %597 = vmatpush1.xpose.msra.mxu0 0.0
        %598 = vmatprep.subr.mxu0 0.0
        %599 = vmatpush1.xpose.msra.mxu0 0.0
        %600 = vmatprep.subr.mxu0 0.0
        %601 = vmatpush1.xpose.msra.mxu0 0.0
        %602 = vmatprep.subr.mxu0 0.0
        %603 = vmatpush1.xpose.msra.mxu0 0.0
        %604 = vmatprep.subr.mxu0 0.0
        %605 = vmatpush1.xpose.msra.mxu0 0.0
        %606 = vmatprep.subr.mxu0 0.0
        %607 = vmatpush1.xpose.msra.mxu0 0.0
        %608 = vmatprep.subr.mxu0 0.0
        %609 = vmatpush1.xpose.msra.mxu0 0.0
        %610 = vmatprep.subr.mxu0 0.0
        %611 = vmatpush1.xpose.msra.mxu0 0.0
        %612 = vmatprep.subr.mxu0 0.0
        %613 = vmatpush1.xpose.msra.mxu0 0.0
        %614 = vmatprep.subr.mxu0 0.0
        %615 = vmatpush1.xpose.msra.mxu0 0.0
        %616 = vmatprep.subr.mxu0 0.0
        %617 = vmatpush1.xpose.msra.mxu0 0.0
        %618 = vmatprep.subr.mxu0 0.0
        %619 = vmatpush1.xpose.msra.mxu0 0.0
        %620 = vmatprep.subr.mxu0 0.0
        %621 = vmatpush1.xpose.msra.mxu0 0.0
        %622 = vmatprep.subr.mxu0 0.0
        %623 = vmatpush1.xpose.msra.mxu0 0.0
        %624 = vmatprep.subr.mxu0 0.0
        %625 = vmatpush1.xpose.msra.mxu0 0.0
        %626 = vmatprep.subr.mxu0 0.0
        %627 = vmatpush1.xpose.msra.mxu0 0.0
        %628 = vmatprep.subr.mxu0 0.0
        %629 = vmatpush1.xpose.msra.mxu0 0.0
        %630 = vmatprep.subr.mxu0 0.0
        %631 = vmatpush1.xpose.msra.mxu0 0.0
        %632 = vmatprep.subr.mxu0 0.0
        %633 = vmatpush1.xpose.msra.mxu0 0.0
        %634 = vmatprep.mubr.f32.mxu0 0.0
        %635 = vmatmul.mubr.f32.gmra.mrb[0].mxu0 %v566
        %v636 = vpop.f32.mrb[0].mxu0
        %v637 = vadd.f32 0.0, %v636
        %v638 = vpop.f32.mrb[0].mxu0
        %639 = vdwg.mxu0
        %v640 = vsel %vm564, %v637, -inf
        %641 = vmax.xlane.f32.xlu0 %v640
        %v642 = vpop.xlane.xlu0 %641
        %v643 = vsub.f32 %v637, %v642
        %v644 = vmul.f32 %v643, 1.442695
        %v645 = vpow.pop %v644
        %v646 = vsel %vm564, %v645, 0.0
        %647 = vadd.xlane.f32.xlu0 %v646
        %v648 = vpop.xlane.xlu0 %647
        %v649 = vrcp.pop %v648
        %v650 = vmul.f32 %v645, %v649
        %651 = vrot.lane.b32.xlu0 %v549, 64
        %v652 = vpop.permute.xlu0 %651
        %v655 = vsel %vm564, %v650, 0
        %657 = vmatprep.subr.mxu0 0.0
        %658 = vmatpush1.msra.mxu0 %v652
        %659 = vmatprep.subr.mxu0 0.0
        %660 = vmatpush1.msra.mxu0 0.0
        %661 = vmatprep.subr.mxu0 0.0
        %662 = vmatpush1.msra.mxu0 0.0
        %663 = vmatprep.subr.mxu0 0.0
        %664 = vmatpush1.msra.mxu0 0.0
        %665 = vmatprep.subr.mxu0 0.0
        %666 = vmatpush1.msra.mxu0 0.0
        %667 = vmatprep.subr.mxu0 0.0
        %668 = vmatpush1.msra.mxu0 0.0
        %669 = vmatprep.subr.mxu0 0.0
        %670 = vmatpush1.msra.mxu0 0.0
        %671 = vmatprep.subr.mxu0 0.0
        %672 = vmatpush1.msra.mxu0 0.0
        %673 = vmatprep.subr.mxu0 0.0
        %674 = vmatpush1.msra.mxu0 0.0
        %675 = vmatprep.subr.mxu0 0.0
        %676 = vmatpush1.msra.mxu0 0.0
        %677 = vmatprep.subr.mxu0 0.0
        %678 = vmatpush1.msra.mxu0 0.0
        %679 = vmatprep.subr.mxu0 0.0
        %680 = vmatpush1.msra.mxu0 0.0
        %681 = vmatprep.subr.mxu0 0.0
        %682 = vmatpush1.msra.mxu0 0.0
        %683 = vmatprep.subr.mxu0 0.0
        %684 = vmatpush1.msra.mxu0 0.0
        %685 = vmatprep.subr.mxu0 0.0
        %686 = vmatpush1.msra.mxu0 0.0
        %687 = vmatprep.subr.mxu0 0.0
        %688 = vmatpush1.msra.mxu0 0.0
        %689 = vmatprep.subr.mxu0 0.0
        %690 = vmatpush1.msra.mxu0 0.0
        %691 = vmatprep.subr.mxu0 0.0
        %692 = vmatpush1.msra.mxu0 0.0
        %693 = vmatprep.subr.mxu0 0.0
        %694 = vmatpush1.msra.mxu0 0.0
        %695 = vmatprep.subr.mxu0 0.0
        %696 = vmatpush1.msra.mxu0 0.0
        %697 = vmatprep.subr.mxu0 0.0
        %698 = vmatpush1.msra.mxu0 0.0
        %699 = vmatprep.subr.mxu0 0.0
        %700 = vmatpush1.msra.mxu0 0.0
        %701 = vmatprep.subr.mxu0 0.0
        %702 = vmatpush1.msra.mxu0 0.0
        %703 = vmatprep.subr.mxu0 0.0
        %704 = vmatpush1.msra.mxu0 0.0
        %705 = vmatprep.subr.mxu0 0.0
        %706 = vmatpush1.msra.mxu0 0.0
        %707 = vmatprep.subr.mxu0 0.0
        %708 = vmatpush1.msra.mxu0 0.0
        %709 = vmatprep.subr.mxu0 0.0
        %710 = vmatpush1.msra.mxu0 0.0
        %711 = vmatprep.subr.mxu0 0.0
        %712 = vmatpush1.msra.mxu0 0.0
        %713 = vmatprep.subr.mxu0 0.0
        %714 = vmatpush1.msra.mxu0 0.0
        %715 = vmatprep.subr.mxu0 0.0
        %716 = vmatpush1.msra.mxu0 0.0
        %717 = vmatprep.subr.mxu0 0.0
        %718 = vmatpush1.msra.mxu0 0.0
        %719 = vmatprep.subr.mxu0 0.0
        %720 = vmatpush1.msra.mxu0 0.0
        %721 = vmatprep.mubr.f32.mxu0 0.0
        %722 = vmatmul.mubr.f32.gmra.mrb[0].mxu0 %v655
        %v723 = vpop.f32.mrb[0].mxu0
        %v724 = vadd.f32 0.0, %v723
        %v725 = vpop.f32.mrb[0].mxu0
        %726 = vdwg.mxu0
        %v727 = vld [vmem:[%s5] sm:$0xff]
        %v729 = vsel %vm564, %v724, 0
        %731 = vmatprep.subr.mxu0 0.0
        %732 = vmatpush1.msra.mxu0 %v727
        %733 = vmatprep.subr.mxu0 0.0
        %734 = vmatpush1.msra.mxu0 0.0
        %735 = vmatprep.subr.mxu0 0.0
        %736 = vmatpush1.msra.mxu0 0.0
        %737 = vmatprep.subr.mxu0 0.0
        %738 = vmatpush1.msra.mxu0 0.0
        %739 = vmatprep.subr.mxu0 0.0
        %740 = vmatpush1.msra.mxu0 0.0
        %741 = vmatprep.subr.mxu0 0.0
        %742 = vmatpush1.msra.mxu0 0.0
        %743 = vmatprep.subr.mxu0 0.0
        %744 = vmatpush1.msra.mxu0 0.0
        %745 = vmatprep.subr.mxu0 0.0
        %746 = vmatpush1.msra.mxu0 0.0
        %747 = vmatprep.subr.mxu0 0.0
        %748 = vmatpush1.msra.mxu0 0.0
        %749 = vmatprep.subr.mxu0 0.0
        %750 = vmatpush1.msra.mxu0 0.0
        %751 = vmatprep.subr.mxu0 0.0
        %752 = vmatpush1.msra.mxu0 0.0
        %753 = vmatprep.subr.mxu0 0.0
        %754 = vmatpush1.msra.mxu0 0.0
        %755 = vmatprep.subr.mxu0 0.0
        %756 = vmatpush1.msra.mxu0 0.0
        %757 = vmatprep.subr.mxu0 0.0
        %758 = vmatpush1.msra.mxu0 0.0
        %759 = vmatprep.subr.mxu0 0.0
        %760 = vmatpush1.msra.mxu0 0.0
        %761 = vmatprep.subr.mxu0 0.0
        %762 = vmatpush1.msra.mxu0 0.0
        %763 = vmatprep.subr.mxu0 0.0
        %764 = vmatpush1.msra.mxu0 0.0
        %765 = vmatprep.subr.mxu0 0.0
        %766 = vmatpush1.msra.mxu0 0.0
        %767 = vmatprep.subr.mxu0 0.0
        %768 = vmatpush1.msra.mxu0 0.0
        %769 = vmatprep.subr.mxu0 0.0
        %770 = vmatpush1.msra.mxu0 0.0
        %771 = vmatprep.subr.mxu0 0.0
        %772 = vmatpush1.msra.mxu0 0.0
        %773 = vmatprep.subr.mxu0 0.0
        %774 = vmatpush1.msra.mxu0 0.0
        %775 = vmatprep.subr.mxu0 0.0
        %776 = vmatpush1.msra.mxu0 0.0
        %777 = vmatprep.subr.mxu0 0.0
        %778 = vmatpush1.msra.mxu0 0.0
        %779 = vmatprep.subr.mxu0 0.0
        %780 = vmatpush1.msra.mxu0 0.0
        %781 = vmatprep.subr.mxu0 0.0
        %782 = vmatpush1.msra.mxu0 0.0
        %783 = vmatprep.subr.mxu0 0.0
        %784 = vmatpush1.msra.mxu0 0.0
        %785 = vmatprep.subr.mxu0 0.0
        %786 = vmatpush1.msra.mxu0 0.0
        %787 = vmatprep.subr.mxu0 0.0
        %788 = vmatpush1.msra.mxu0 0.0
        %789 = vmatprep.subr.mxu0 0.0
        %790 = vmatpush1.msra.mxu0 0.0
        %791 = vmatprep.subr.mxu0 0.0
        %792 = vmatpush1.msra.mxu0 0.0
        %793 = vmatprep.subr.mxu0 0.0
        %794 = vmatpush1.msra.mxu0 0.0
        %795 = vmatprep.mubr.f32.mxu0 0.0
        %796 = vmatmul.mubr.f32.gmra.mrb[0].mxu0 %v729
        %v797 = vpop.f32.mrb[0].mxu0
        %v798 = vadd.f32 0.0, %v797
        %v799 = vpop.f32.mrb[0].mxu0
        %800 = vdwg.mxu0
        %v801 = vadd.f32 %v560, %v798
        %802 = vrot.lane.b32.xlu0 %v552, 120
        %v803 = vpop.permute.xlu0 %802
        %804 = vrot.lane.b32.xlu0 %v549, 88
        %v805 = vpop.permute.xlu0 %804
        %v806 = vsel %vm564, %v803, 0
        %v808 = vsel %vm564, %v805, 0
        %810 = vmatprep.subr.mxu0 0.0
        %811 = vmatpush1.xpose.msra.mxu0 %v808
        %812 = vmatprep.subr.mxu0 0.0
        %813 = vmatpush1.xpose.msra.mxu0 0.0
        %814 = vmatprep.subr.mxu0 0.0
        %815 = vmatpush1.xpose.msra.mxu0 0.0
        %816 = vmatprep.subr.mxu0 0.0
        %817 = vmatpush1.xpose.msra.mxu0 0.0
        %818 = vmatprep.subr.mxu0 0.0
        %819 = vmatpush1.xpose.msra.mxu0 0.0
        %820 = vmatprep.subr.mxu0 0.0
        %821 = vmatpush1.xpose.msra.mxu0 0.0
        %822 = vmatprep.subr.mxu0 0.0
        %823 = vmatpush1.xpose.msra.mxu0 0.0
        %824 = vmatprep.subr.mxu0 0.0
        %825 = vmatpush1.xpose.msra.mxu0 0.0
        %826 = vmatprep.subr.mxu0 0.0
        %827 = vmatpush1.xpose.msra.mxu0 0.0
        %828 = vmatprep.subr.mxu0 0.0
        %829 = vmatpush1.xpose.msra.mxu0 0.0
        %830 = vmatprep.subr.mxu0 0.0
        %831 = vmatpush1.xpose.msra.mxu0 0.0
        %832 = vmatprep.subr.mxu0 0.0
        %833 = vmatpush1.xpose.msra.mxu0 0.0
        %834 = vmatprep.subr.mxu0 0.0
        %835 = vmatpush1.xpose.msra.mxu0 0.0
        %836 = vmatprep.subr.mxu0 0.0
        %837 = vmatpush1.xpose.msra.mxu0 0.0
        %838 = vmatprep.subr.mxu0 0.0
        %839 = vmatpush1.xpose.msra.mxu0 0.0
        %840 = vmatprep.subr.mxu0 0.0
        %841 = vmatpush1.xpose.msra.mxu0 0.0
        %842 = vmatprep.subr.mxu0 0.0
        %843 = vmatpush1.xpose.msra.mxu0 0.0
        %844 = vmatprep.subr.mxu0 0.0
        %845 = vmatpush1.xpose.msra.mxu0 0.0
        %846 = vmatprep.subr.mxu0 0.0
        %847 = vmatpush1.xpose.msra.mxu0 0.0
        %848 = vmatprep.subr.mxu0 0.0
        %849 = vmatpush1.xpose.msra.mxu0 0.0
        %850 = vmatprep.subr.mxu0 0.0
        %851 = vmatpush1.xpose.msra.mxu0 0.0
        %852 = vmatprep.subr.mxu0 0.0
        %853 = vmatpush1.xpose.msra.mxu0 0.0
        %854 = vmatprep.subr.mxu0 0.0
        %855 = vmatpush1.xpose.msra.mxu0 0.0
        %856 = vmatprep.subr.mxu0 0.0
        %857 = vmatpush1.xpose.msra.mxu0 0.0
        %858 = vmatprep.subr.mxu0 0.0
        %859 = vmatpush1.xpose.msra.mxu0 0.0
        %860 = vmatprep.subr.mxu0 0.0
        %861 = vmatpush1.xpose.msra.mxu0 0.0
        %862 = vmatprep.subr.mxu0 0.0
        %863 = vmatpush1.xpose.msra.mxu0 0.0
        %864 = vmatprep.subr.mxu0 0.0
        %865 = vmatpush1.xpose.msra.mxu0 0.0
        %866 = vmatprep.subr.mxu0 0.0
        %867 = vmatpush1.xpose.msra.mxu0 0.0
        %868 = vmatprep.subr.mxu0 0.0
        %869 = vmatpush1.xpose.msra.mxu0 0.0
        %870 = vmatprep.subr.mxu0 0.0
        %871 = vmatpush1.xpose.msra.mxu0 0.0
        %872 = vmatprep.subr.mxu0 0.0
        %873 = vmatpush1.xpose.msra.mxu0 0.0
        %874 = vmatprep.mubr.f32.mxu0 0.0
        %875 = vmatmul.mubr.f32.gmra.mrb[0].mxu0 %v806
        %v876 = vpop.f32.mrb[0].mxu0
        %v877 = vadd.f32 0.0, %v876
        %v878 = vpop.f32.mrb[0].mxu0
        %879 = vdwg.mxu0
        %v880 = vsel %vm564, %v877, -inf
        %881 = vmax.xlane.f32.xlu0 %v880
        %v882 = vpop.xlane.xlu0 %881
        %v883 = vsub.f32 %v877, %v882
        %v884 = vmul.f32 %v883, 1.442695
        %v885 = vpow.pop %v884
        %v886 = vsel %vm564, %v885, 0.0
        %887 = vadd.xlane.f32.xlu0 %v886
        %v888 = vpop.xlane.xlu0 %887
        %v889 = vrcp.pop %v888
        %v890 = vmul.f32 %v885, %v889
        %891 = vrot.lane.b32.xlu0 %v549, 56
        %v892 = vpop.permute.xlu0 %891
        %v895 = vsel %vm564, %v890, 0
        %897 = vmatprep.subr.mxu0 0.0
        %898 = vmatpush1.msra.mxu0 %v892
        %899 = vmatprep.subr.mxu0 0.0
        %900 = vmatpush1.msra.mxu0 0.0
        %901 = vmatprep.subr.mxu0 0.0
        %902 = vmatpush1.msra.mxu0 0.0
        %903 = vmatprep.subr.mxu0 0.0
        %904 = vmatpush1.msra.mxu0 0.0
        %905 = vmatprep.subr.mxu0 0.0
        %906 = vmatpush1.msra.mxu0 0.0
        %907 = vmatprep.subr.mxu0 0.0
        %908 = vmatpush1.msra.mxu0 0.0
        %909 = vmatprep.subr.mxu0 0.0
        %910 = vmatpush1.msra.mxu0 0.0
        %911 = vmatprep.subr.mxu0 0.0
        %912 = vmatpush1.msra.mxu0 0.0
        %913 = vmatprep.subr.mxu0 0.0
        %914 = vmatpush1.msra.mxu0 0.0
        %915 = vmatprep.subr.mxu0 0.0
        %916 = vmatpush1.msra.mxu0 0.0
        %917 = vmatprep.subr.mxu0 0.0
        %918 = vmatpush1.msra.mxu0 0.0
        %919 = vmatprep.subr.mxu0 0.0
        %920 = vmatpush1.msra.mxu0 0.0
        %921 = vmatprep.subr.mxu0 0.0
        %922 = vmatpush1.msra.mxu0 0.0
        %923 = vmatprep.subr.mxu0 0.0
        %924 = vmatpush1.msra.mxu0 0.0
        %925 = vmatprep.subr.mxu0 0.0
        %926 = vmatpush1.msra.mxu0 0.0
        %927 = vmatprep.subr.mxu0 0.0
        %928 = vmatpush1.msra.mxu0 0.0
        %929 = vmatprep.subr.mxu0 0.0
        %930 = vmatpush1.msra.mxu0 0.0
        %931 = vmatprep.subr.mxu0 0.0
        %932 = vmatpush1.msra.mxu0 0.0
        %933 = vmatprep.subr.mxu0 0.0
        %934 = vmatpush1.msra.mxu0 0.0
        %935 = vmatprep.subr.mxu0 0.0
        %936 = vmatpush1.msra.mxu0 0.0
        %937 = vmatprep.subr.mxu0 0.0
        %938 = vmatpush1.msra.mxu0 0.0
        %939 = vmatprep.subr.mxu0 0.0
        %940 = vmatpush1.msra.mxu0 0.0
        %941 = vmatprep.subr.mxu0 0.0
        %942 = vmatpush1.msra.mxu0 0.0
        %943 = vmatprep.subr.mxu0 0.0
        %944 = vmatpush1.msra.mxu0 0.0
        %945 = vmatprep.subr.mxu0 0.0
        %946 = vmatpush1.msra.mxu0 0.0
        %947 = vmatprep.subr.mxu0 0.0
        %948 = vmatpush1.msra.mxu0 0.0
        %949 = vmatprep.subr.mxu0 0.0
        %950 = vmatpush1.msra.mxu0 0.0
        %951 = vmatprep.subr.mxu0 0.0
        %952 = vmatpush1.msra.mxu0 0.0
        %953 = vmatprep.subr.mxu0 0.0
        %954 = vmatpush1.msra.mxu0 0.0
        %955 = vmatprep.subr.mxu0 0.0
        %956 = vmatpush1.msra.mxu0 0.0
        %957 = vmatprep.subr.mxu0 0.0
        %958 = vmatpush1.msra.mxu0 0.0
        %959 = vmatprep.subr.mxu0 0.0
        %960 = vmatpush1.msra.mxu0 0.0
        %961 = vmatprep.mubr.f32.mxu0 0.0
        %962 = vmatmul.mubr.f32.gmra.mrb[0].mxu0 %v895
        %v963 = vpop.f32.mrb[0].mxu0
        %v964 = vadd.f32 0.0, %v963
        %v965 = vpop.f32.mrb[0].mxu0
        %966 = vdwg.mxu0
        %v967 = vld [vmem:[%s5 + $0x8] sm:$0xff]
        %v969 = vsel %vm564, %v964, 0
        %971 = vmatprep.subr.mxu0 0.0
        %972 = vmatpush1.msra.mxu0 %v967
        %973 = vmatprep.subr.mxu0 0.0
        %974 = vmatpush1.msra.mxu0 0.0
        %975 = vmatprep.subr.mxu0 0.0
        %976 = vmatpush1.msra.mxu0 0.0
        %977 = vmatprep.subr.mxu0 0.0
        %978 = vmatpush1.msra.mxu0 0.0
        %979 = vmatprep.subr.mxu0 0.0
        %980 = vmatpush1.msra.mxu0 0.0
        %981 = vmatprep.subr.mxu0 0.0
        %982 = vmatpush1.msra.mxu0 0.0
        %983 = vmatprep.subr.mxu0 0.0
        %984 = vmatpush1.msra.mxu0 0.0
        %985 = vmatprep.subr.mxu0 0.0
        %986 = vmatpush1.msra.mxu0 0.0
        %987 = vmatprep.subr.mxu0 0.0
        %988 = vmatpush1.msra.mxu0 0.0
        %989 = vmatprep.subr.mxu0 0.0
        %990 = vmatpush1.msra.mxu0 0.0
        %991 = vmatprep.subr.mxu0 0.0
        %992 = vmatpush1.msra.mxu0 0.0
        %993 = vmatprep.subr.mxu0 0.0
        %994 = vmatpush1.msra.mxu0 0.0
        %995 = vmatprep.subr.mxu0 0.0
        %996 = vmatpush1.msra.mxu0 0.0
        %997 = vmatprep.subr.mxu0 0.0
        %998 = vmatpush1.msra.mxu0 0.0
        %999 = vmatprep.subr.mxu0 0.0
        %1000 = vmatpush1.msra.mxu0 0.0
        %1001 = vmatprep.subr.mxu0 0.0
        %1002 = vmatpush1.msra.mxu0 0.0
        %1003 = vmatprep.subr.mxu0 0.0
        %1004 = vmatpush1.msra.mxu0 0.0
        %1005 = vmatprep.subr.mxu0 0.0
        %1006 = vmatpush1.msra.mxu0 0.0
        %1007 = vmatprep.subr.mxu0 0.0
        %1008 = vmatpush1.msra.mxu0 0.0
        %1009 = vmatprep.subr.mxu0 0.0
        %1010 = vmatpush1.msra.mxu0 0.0
        %1011 = vmatprep.subr.mxu0 0.0
        %1012 = vmatpush1.msra.mxu0 0.0
        %1013 = vmatprep.subr.mxu0 0.0
        %1014 = vmatpush1.msra.mxu0 0.0
        %1015 = vmatprep.subr.mxu0 0.0
        %1016 = vmatpush1.msra.mxu0 0.0
        %1017 = vmatprep.subr.mxu0 0.0
        %1018 = vmatpush1.msra.mxu0 0.0
        %1019 = vmatprep.subr.mxu0 0.0
        %1020 = vmatpush1.msra.mxu0 0.0
        %1021 = vmatprep.subr.mxu0 0.0
        %1022 = vmatpush1.msra.mxu0 0.0
        %1023 = vmatprep.subr.mxu0 0.0
        %1024 = vmatpush1.msra.mxu0 0.0
        %1025 = vmatprep.subr.mxu0 0.0
        %1026 = vmatpush1.msra.mxu0 0.0
        %1027 = vmatprep.subr.mxu0 0.0
        %1028 = vmatpush1.msra.mxu0 0.0
        %1029 = vmatprep.subr.mxu0 0.0
        %1030 = vmatpush1.msra.mxu0 0.0
        %1031 = vmatprep.subr.mxu0 0.0
        %1032 = vmatpush1.msra.mxu0 0.0
        %1033 = vmatprep.subr.mxu0 0.0
        %1034 = vmatpush1.msra.mxu0 0.0
        %1035 = vmatprep.mubr.f32.mxu0 0.0
        %1036 = vmatmul.mubr.f32.gmra.mrb[0].mxu0 %v969
        %v1037 = vpop.f32.mrb[0].mxu0
        %v1038 = vadd.f32 0.0, %v1037
        %v1039 = vpop.f32.mrb[0].mxu0
        %1040 = vdwg.mxu0
        %v1041 = vadd.f32 %v801, %v1038
        %1042 = vrot.lane.b32.xlu0 %v552, 112
        %v1043 = vpop.permute.xlu0 %1042
        %1044 = vrot.lane.b32.xlu0 %v549, 80
        %v1045 = vpop.permute.xlu0 %1044
        %v1046 = vsel %vm564, %v1043, 0
        %v1048 = vsel %vm564, %v1045, 0
        %1050 = vmatprep.subr.mxu0 0.0
        %1051 = vmatpush1.xpose.msra.mxu0 %v1048
        %1052 = vmatprep.subr.mxu0 0.0
        %1053 = vmatpush1.xpose.msra.mxu0 0.0
        %1054 = vmatprep.subr.mxu0 0.0
        %1055 = vmatpush1.xpose.msra.mxu0 0.0
        %1056 = vmatprep.subr.mxu0 0.0
        %1057 = vmatpush1.xpose.msra.mxu0 0.0
        %1058 = vmatprep.subr.mxu0 0.0
        %1059 = vmatpush1.xpose.msra.mxu0 0.0
        %1060 = vmatprep.subr.mxu0 0.0
        %1061 = vmatpush1.xpose.msra.mxu0 0.0
        %1062 = vmatprep.subr.mxu0 0.0
        %1063 = vmatpush1.xpose.msra.mxu0 0.0
        %1064 = vmatprep.subr.mxu0 0.0
        %1065 = vmatpush1.xpose.msra.mxu0 0.0
        %1066 = vmatprep.subr.mxu0 0.0
        %1067 = vmatpush1.xpose.msra.mxu0 0.0
        %1068 = vmatprep.subr.mxu0 0.0
        %1069 = vmatpush1.xpose.msra.mxu0 0.0
        %1070 = vmatprep.subr.mxu0 0.0
        %1071 = vmatpush1.xpose.msra.mxu0 0.0
        %1072 = vmatprep.subr.mxu0 0.0
        %1073 = vmatpush1.xpose.msra.mxu0 0.0
        %1074 = vmatprep.subr.mxu0 0.0
        %1075 = vmatpush1.xpose.msra.mxu0 0.0
        %1076 = vmatprep.subr.mxu0 0.0
        %1077 = vmatpush1.xpose.msra.mxu0 0.0
        %1078 = vmatprep.subr.mxu0 0.0
        %1079 = vmatpush1.xpose.msra.mxu0 0.0
        %1080 = vmatprep.subr.mxu0 0.0
        %1081 = vmatpush1.xpose.msra.mxu0 0.0
        %1082 = vmatprep.subr.mxu0 0.0
        %1083 = vmatpush1.xpose.msra.mxu0 0.0
        %1084 = vmatprep.subr.mxu0 0.0
        %1085 = vmatpush1.xpose.msra.mxu0 0.0
        %1086 = vmatprep.subr.mxu0 0.0
        %1087 = vmatpush1.xpose.msra.mxu0 0.0
        %1088 = vmatprep.subr.mxu0 0.0
        %1089 = vmatpush1.xpose.msra.mxu0 0.0
        %1090 = vmatprep.subr.mxu0 0.0
        %1091 = vmatpush1.xpose.msra.mxu0 0.0
        %1092 = vmatprep.subr.mxu0 0.0
        %1093 = vmatpush1.xpose.msra.mxu0 0.0
        %1094 = vmatprep.subr.mxu0 0.0
        %1095 = vmatpush1.xpose.msra.mxu0 0.0
        %1096 = vmatprep.subr.mxu0 0.0
        %1097 = vmatpush1.xpose.msra.mxu0 0.0
        %1098 = vmatprep.subr.mxu0 0.0
        %1099 = vmatpush1.xpose.msra.mxu0 0.0
        %1100 = vmatprep.subr.mxu0 0.0
        %1101 = vmatpush1.xpose.msra.mxu0 0.0
        %1102 = vmatprep.subr.mxu0 0.0
        %1103 = vmatpush1.xpose.msra.mxu0 0.0
        %1104 = vmatprep.subr.mxu0 0.0
        %1105 = vmatpush1.xpose.msra.mxu0 0.0
        %1106 = vmatprep.subr.mxu0 0.0
        %1107 = vmatpush1.xpose.msra.mxu0 0.0
        %1108 = vmatprep.subr.mxu0 0.0
        %1109 = vmatpush1.xpose.msra.mxu0 0.0
        %1110 = vmatprep.subr.mxu0 0.0
        %1111 = vmatpush1.xpose.msra.mxu0 0.0
        %1112 = vmatprep.subr.mxu0 0.0
        %1113 = vmatpush1.xpose.msra.mxu0 0.0
        %1114 = vmatprep.mubr.f32.mxu0 0.0
        %1115 = vmatmul.mubr.f32.gmra.mrb[0].mxu0 %v1046
        %v1116 = vpop.f32.mrb[0].mxu0
        %v1117 = vadd.f32 0.0, %v1116
        %v1118 = vpop.f32.mrb[0].mxu0
        %1119 = vdwg.mxu0
        %v1120 = vsel %vm564, %v1117, -inf
        %1121 = vmax.xlane.f32.xlu0 %v1120
        %v1122 = vpop.xlane.xlu0 %1121
        %v1123 = vsub.f32 %v1117, %v1122
        %v1124 = vmul.f32 %v1123, 1.442695
        %v1125 = vpow.pop %v1124
        %v1126 = vsel %vm564, %v1125, 0.0
        %1127 = vadd.xlane.f32.xlu0 %v1126
        %v1128 = vpop.xlane.xlu0 %1127
        %v1129 = vrcp.pop %v1128
        %v1130 = vmul.f32 %v1125, %v1129
        %1131 = vrot.lane.b32.xlu0 %v549, 48
        %v1132 = vpop.permute.xlu0 %1131
        %v1135 = vsel %vm564, %v1130, 0
        %1137 = vmatprep.subr.mxu0 0.0
        %1138 = vmatpush1.msra.mxu0 %v1132
        %1139 = vmatprep.subr.mxu0 0.0
        %1140 = vmatpush1.msra.mxu0 0.0
        %1141 = vmatprep.subr.mxu0 0.0
        %1142 = vmatpush1.msra.mxu0 0.0
        %1143 = vmatprep.subr.mxu0 0.0
        %1144 = vmatpush1.msra.mxu0 0.0
        %1145 = vmatprep.subr.mxu0 0.0
        %1146 = vmatpush1.msra.mxu0 0.0
        %1147 = vmatprep.subr.mxu0 0.0
        %1148 = vmatpush1.msra.mxu0 0.0
        %1149 = vmatprep.subr.mxu0 0.0
        %1150 = vmatpush1.msra.mxu0 0.0
        %1151 = vmatprep.subr.mxu0 0.0
        %1152 = vmatpush1.msra.mxu0 0.0
        %1153 = vmatprep.subr.mxu0 0.0
        %1154 = vmatpush1.msra.mxu0 0.0
        %1155 = vmatprep.subr.mxu0 0.0
        %1156 = vmatpush1.msra.mxu0 0.0
        %1157 = vmatprep.subr.mxu0 0.0
        %1158 = vmatpush1.msra.mxu0 0.0
        %1159 = vmatprep.subr.mxu0 0.0
        %1160 = vmatpush1.msra.mxu0 0.0
        %1161 = vmatprep.subr.mxu0 0.0
        %1162 = vmatpush1.msra.mxu0 0.0
        %1163 = vmatprep.subr.mxu0 0.0
        %1164 = vmatpush1.msra.mxu0 0.0
        %1165 = vmatprep.subr.mxu0 0.0
        %1166 = vmatpush1.msra.mxu0 0.0
        %1167 = vmatprep.subr.mxu0 0.0
        %1168 = vmatpush1.msra.mxu0 0.0
        %1169 = vmatprep.subr.mxu0 0.0
        %1170 = vmatpush1.msra.mxu0 0.0
        %1171 = vmatprep.subr.mxu0 0.0
        %1172 = vmatpush1.msra.mxu0 0.0
        %1173 = vmatprep.subr.mxu0 0.0
        %1174 = vmatpush1.msra.mxu0 0.0
        %1175 = vmatprep.subr.mxu0 0.0
        %1176 = vmatpush1.msra.mxu0 0.0
        %1177 = vmatprep.subr.mxu0 0.0
        %1178 = vmatpush1.msra.mxu0 0.0
        %1179 = vmatprep.subr.mxu0 0.0
        %1180 = vmatpush1.msra.mxu0 0.0
        %1181 = vmatprep.subr.mxu0 0.0
        %1182 = vmatpush1.msra.mxu0 0.0
        %1183 = vmatprep.subr.mxu0 0.0
        %1184 = vmatpush1.msra.mxu0 0.0
        %1185 = vmatprep.subr.mxu0 0.0
        %1186 = vmatpush1.msra.mxu0 0.0
        %1187 = vmatprep.subr.mxu0 0.0
        %1188 = vmatpush1.msra.mxu0 0.0
        %1189 = vmatprep.subr.mxu0 0.0
        %1190 = vmatpush1.msra.mxu0 0.0
        %1191 = vmatprep.subr.mxu0 0.0
        %1192 = vmatpush1.msra.mxu0 0.0
        %1193 = vmatprep.subr.mxu0 0.0
        %1194 = vmatpush1.msra.mxu0 0.0
        %1195 = vmatprep.subr.mxu0 0.0
        %1196 = vmatpush1.msra.mxu0 0.0
        %1197 = vmatprep.subr.mxu0 0.0
        %1198 = vmatpush1.msra.mxu0 0.0
        %1199 = vmatprep.subr.mxu0 0.0
        %1200 = vmatpush1.msra.mxu0 0.0
        %1201 = vmatprep.mubr.f32.mxu0 0.0
        %1202 = vmatmul.mubr.f32.gmra.mrb[0].mxu0 %v1135
        %v1203 = vpop.f32.mrb[0].mxu0
        %v1204 = vadd.f32 0.0, %v1203
        %v1205 = vpop.f32.mrb[0].mxu0
        %1206 = vdwg.mxu0
        %v1207 = vld [vmem:[%s5 + $0x10] sm:$0xff]
        %v1209 = vsel %vm564, %v1204, 0
        %1211 = vmatprep.subr.mxu0 0.0
        %1212 = vmatpush1.msra.mxu0 %v1207
        %1213 = vmatprep.subr.mxu0 0.0
        %1214 = vmatpush1.msra.mxu0 0.0
        %1215 = vmatprep.subr.mxu0 0.0
        %1216 = vmatpush1.msra.mxu0 0.0
        %1217 = vmatprep.subr.mxu0 0.0
        %1218 = vmatpush1.msra.mxu0 0.0
        %1219 = vmatprep.subr.mxu0 0.0
        %1220 = vmatpush1.msra.mxu0 0.0
        %1221 = vmatprep.subr.mxu0 0.0
        %1222 = vmatpush1.msra.mxu0 0.0
        %1223 = vmatprep.subr.mxu0 0.0
        %1224 = vmatpush1.msra.mxu0 0.0
        %1225 = vmatprep.subr.mxu0 0.0
        %1226 = vmatpush1.msra.mxu0 0.0
        %1227 = vmatprep.subr.mxu0 0.0
        %1228 = vmatpush1.msra.mxu0 0.0
        %1229 = vmatprep.subr.mxu0 0.0
        %1230 = vmatpush1.msra.mxu0 0.0
        %1231 = vmatprep.subr.mxu0 0.0
        %1232 = vmatpush1.msra.mxu0 0.0
        %1233 = vmatprep.subr.mxu0 0.0
        %1234 = vmatpush1.msra.mxu0 0.0
        %1235 = vmatprep.subr.mxu0 0.0
        %1236 = vmatpush1.msra.mxu0 0.0
        %1237 = vmatprep.subr.mxu0 0.0
        %1238 = vmatpush1.msra.mxu0 0.0
        %1239 = vmatprep.subr.mxu0 0.0
        %1240 = vmatpush1.msra.mxu0 0.0
        %1241 = vmatprep.subr.mxu0 0.0
        %1242 = vmatpush1.msra.mxu0 0.0
        %1243 = vmatprep.subr.mxu0 0.0
        %1244 = vmatpush1.msra.mxu0 0.0
        %1245 = vmatprep.subr.mxu0 0.0
        %1246 = vmatpush1.msra.mxu0 0.0
        %1247 = vmatprep.subr.mxu0 0.0
        %1248 = vmatpush1.msra.mxu0 0.0
        %1249 = vmatprep.subr.mxu0 0.0
        %1250 = vmatpush1.msra.mxu0 0.0
        %1251 = vmatprep.subr.mxu0 0.0
        %1252 = vmatpush1.msra.mxu0 0.0
        %1253 = vmatprep.subr.mxu0 0.0
        %1254 = vmatpush1.msra.mxu0 0.0
        %1255 = vmatprep.subr.mxu0 0.0
        %1256 = vmatpush1.msra.mxu0 0.0
        %1257 = vmatprep.subr.mxu0 0.0
        %1258 = vmatpush1.msra.mxu0 0.0
        %1259 = vmatprep.subr.mxu0 0.0
        %1260 = vmatpush1.msra.mxu0 0.0
        %1261 = vmatprep.subr.mxu0 0.0
        %1262 = vmatpush1.msra.mxu0 0.0
        %1263 = vmatprep.subr.mxu0 0.0
        %1264 = vmatpush1.msra.mxu0 0.0
        %1265 = vmatprep.subr.mxu0 0.0
        %1266 = vmatpush1.msra.mxu0 0.0
        %1267 = vmatprep.subr.mxu0 0.0
        %1268 = vmatpush1.msra.mxu0 0.0
        %1269 = vmatprep.subr.mxu0 0.0
        %1270 = vmatpush1.msra.mxu0 0.0
        %1271 = vmatprep.subr.mxu0 0.0
        %1272 = vmatpush1.msra.mxu0 0.0
        %1273 = vmatprep.subr.mxu0 0.0
        %1274 = vmatpush1.msra.mxu0 0.0
        %1275 = vmatprep.mubr.f32.mxu0 0.0
        %1276 = vmatmul.mubr.f32.gmra.mrb[0].mxu0 %v1209
        %v1277 = vpop.f32.mrb[0].mxu0
        %v1278 = vadd.f32 0.0, %v1277
        %v1279 = vpop.f32.mrb[0].mxu0
        %1280 = vdwg.mxu0
        %v1281 = vadd.f32 %v1041, %v1278
        %1282 = vrot.lane.b32.xlu0 %v552, 104
        %v1283 = vpop.permute.xlu0 %1282
        %1284 = vrot.lane.b32.xlu0 %v549, 72
        %v1285 = vpop.permute.xlu0 %1284
        %v1286 = vsel %vm564, %v1283, 0
        %v1288 = vsel %vm564, %v1285, 0
        %1290 = vmatprep.subr.mxu0 0.0
        %1291 = vmatpush1.xpose.msra.mxu0 %v1288
        %1292 = vmatprep.subr.mxu0 0.0
        %1293 = vmatpush1.xpose.msra.mxu0 0.0
        %1294 = vmatprep.subr.mxu0 0.0
        %1295 = vmatpush1.xpose.msra.mxu0 0.0
        %1296 = vmatprep.subr.mxu0 0.0
        %1297 = vmatpush1.xpose.msra.mxu0 0.0
        %1298 = vmatprep.subr.mxu0 0.0
        %1299 = vmatpush1.xpose.msra.mxu0 0.0
        %1300 = vmatprep.subr.mxu0 0.0
        %1301 = vmatpush1.xpose.msra.mxu0 0.0
        %1302 = vmatprep.subr.mxu0 0.0
        %1303 = vmatpush1.xpose.msra.mxu0 0.0
        %1304 = vmatprep.subr.mxu0 0.0
        %1305 = vmatpush1.xpose.msra.mxu0 0.0
        %1306 = vmatprep.subr.mxu0 0.0
        %1307 = vmatpush1.xpose.msra.mxu0 0.0
        %1308 = vmatprep.subr.mxu0 0.0
        %1309 = vmatpush1.xpose.msra.mxu0 0.0
        %1310 = vmatprep.subr.mxu0 0.0
        %1311 = vmatpush1.xpose.msra.mxu0 0.0
        %1312 = vmatprep.subr.mxu0 0.0
        %1313 = vmatpush1.xpose.msra.mxu0 0.0
        %1314 = vmatprep.subr.mxu0 0.0
        %1315 = vmatpush1.xpose.msra.mxu0 0.0
        %1316 = vmatprep.subr.mxu0 0.0
        %1317 = vmatpush1.xpose.msra.mxu0 0.0
        %1318 = vmatprep.subr.mxu0 0.0
        %1319 = vmatpush1.xpose.msra.mxu0 0.0
        %1320 = vmatprep.subr.mxu0 0.0
        %1321 = vmatpush1.xpose.msra.mxu0 0.0
        %1322 = vmatprep.subr.mxu0 0.0
        %1323 = vmatpush1.xpose.msra.mxu0 0.0
        %1324 = vmatprep.subr.mxu0 0.0
        %1325 = vmatpush1.xpose.msra.mxu0 0.0
        %1326 = vmatprep.subr.mxu0 0.0
        %1327 = vmatpush1.xpose.msra.mxu0 0.0
        %1328 = vmatprep.subr.mxu0 0.0
        %1329 = vmatpush1.xpose.msra.mxu0 0.0
        %1330 = vmatprep.subr.mxu0 0.0
        %1331 = vmatpush1.xpose.msra.mxu0 0.0
        %1332 = vmatprep.subr.mxu0 0.0
        %1333 = vmatpush1.xpose.msra.mxu0 0.0
        %1334 = vmatprep.subr.mxu0 0.0
        %1335 = vmatpush1.xpose.msra.mxu0 0.0
        %1336 = vmatprep.subr.mxu0 0.0
        %1337 = vmatpush1.xpose.msra.mxu0 0.0
        %1338 = vmatprep.subr.mxu0 0.0
        %1339 = vmatpush1.xpose.msra.mxu0 0.0
        %1340 = vmatprep.subr.mxu0 0.0
        %1341 = vmatpush1.xpose.msra.mxu0 0.0
        %1342 = vmatprep.subr.mxu0 0.0
        %1343 = vmatpush1.xpose.msra.mxu0 0.0
        %1344 = vmatprep.subr.mxu0 0.0
        %1345 = vmatpush1.xpose.msra.mxu0 0.0
        %1346 = vmatprep.subr.mxu0 0.0
        %1347 = vmatpush1.xpose.msra.mxu0 0.0
        %1348 = vmatprep.subr.mxu0 0.0
        %1349 = vmatpush1.xpose.msra.mxu0 0.0
        %1350 = vmatprep.subr.mxu0 0.0
        %1351 = vmatpush1.xpose.msra.mxu0 0.0
        %1352 = vmatprep.subr.mxu0 0.0
        %1353 = vmatpush1.xpose.msra.mxu0 0.0
        %1354 = vmatprep.mubr.f32.mxu0 0.0
        %1355 = vmatmul.mubr.f32.gmra.mrb[0].mxu0 %v1286
        %v1356 = vpop.f32.mrb[0].mxu0
        %v1357 = vadd.f32 0.0, %v1356
        %v1358 = vpop.f32.mrb[0].mxu0
        %1359 = vdwg.mxu0
        %v1360 = vsel %vm564, %v1357, -inf
        %1361 = vmax.xlane.f32.xlu0 %v1360
        %v1362 = vpop.xlane.xlu0 %1361
        %v1363 = vsub.f32 %v1357, %v1362
        %v1364 = vmul.f32 %v1363, 1.442695
        %v1365 = vpow.pop %v1364
        %v1366 = vsel %vm564, %v1365, 0.0
        %1367 = vadd.xlane.f32.xlu0 %v1366
        %v1368 = vpop.xlane.xlu0 %1367
        %v1369 = vrcp.pop %v1368
        %v1370 = vmul.f32 %v1365, %v1369
        %1371 = vrot.lane.b32.xlu0 %v549, 40
        %v1372 = vpop.permute.xlu0 %1371
        %v1375 = vsel %vm564, %v1370, 0
        %1377 = vmatprep.subr.mxu0 0.0
        %1378 = vmatpush1.msra.mxu0 %v1372
        %1379 = vmatprep.subr.mxu0 0.0
        %1380 = vmatpush1.msra.mxu0 0.0
        %1381 = vmatprep.subr.mxu0 0.0
        %1382 = vmatpush1.msra.mxu0 0.0
        %1383 = vmatprep.subr.mxu0 0.0
        %1384 = vmatpush1.msra.mxu0 0.0
        %1385 = vmatprep.subr.mxu0 0.0
        %1386 = vmatpush1.msra.mxu0 0.0
        %1387 = vmatprep.subr.mxu0 0.0
        %1388 = vmatpush1.msra.mxu0 0.0
        %1389 = vmatprep.subr.mxu0 0.0
        %1390 = vmatpush1.msra.mxu0 0.0
        %1391 = vmatprep.subr.mxu0 0.0
        %1392 = vmatpush1.msra.mxu0 0.0
        %1393 = vmatprep.subr.mxu0 0.0
        %1394 = vmatpush1.msra.mxu0 0.0
        %1395 = vmatprep.subr.mxu0 0.0
        %1396 = vmatpush1.msra.mxu0 0.0
        %1397 = vmatprep.subr.mxu0 0.0
        %1398 = vmatpush1.msra.mxu0 0.0
        %1399 = vmatprep.subr.mxu0 0.0
        %1400 = vmatpush1.msra.mxu0 0.0
        %1401 = vmatprep.subr.mxu0 0.0
        %1402 = vmatpush1.msra.mxu0 0.0
        %1403 = vmatprep.subr.mxu0 0.0
        %1404 = vmatpush1.msra.mxu0 0.0
        %1405 = vmatprep.subr.mxu0 0.0
        %1406 = vmatpush1.msra.mxu0 0.0
        %1407 = vmatprep.subr.mxu0 0.0
        %1408 = vmatpush1.msra.mxu0 0.0
        %1409 = vmatprep.subr.mxu0 0.0
        %1410 = vmatpush1.msra.mxu0 0.0
        %1411 = vmatprep.subr.mxu0 0.0
        %1412 = vmatpush1.msra.mxu0 0.0
        %1413 = vmatprep.subr.mxu0 0.0
        %1414 = vmatpush1.msra.mxu0 0.0
        %1415 = vmatprep.subr.mxu0 0.0
        %1416 = vmatpush1.msra.mxu0 0.0
        %1417 = vmatprep.subr.mxu0 0.0
        %1418 = vmatpush1.msra.mxu0 0.0
        %1419 = vmatprep.subr.mxu0 0.0
        %1420 = vmatpush1.msra.mxu0 0.0
        %1421 = vmatprep.subr.mxu0 0.0
        %1422 = vmatpush1.msra.mxu0 0.0
        %1423 = vmatprep.subr.mxu0 0.0
        %1424 = vmatpush1.msra.mxu0 0.0
        %1425 = vmatprep.subr.mxu0 0.0
        %1426 = vmatpush1.msra.mxu0 0.0
        %1427 = vmatprep.subr.mxu0 0.0
        %1428 = vmatpush1.msra.mxu0 0.0
        %1429 = vmatprep.subr.mxu0 0.0
        %1430 = vmatpush1.msra.mxu0 0.0
        %1431 = vmatprep.subr.mxu0 0.0
        %1432 = vmatpush1.msra.mxu0 0.0
        %1433 = vmatprep.subr.mxu0 0.0
        %1434 = vmatpush1.msra.mxu0 0.0
        %1435 = vmatprep.subr.mxu0 0.0
        %1436 = vmatpush1.msra.mxu0 0.0
        %1437 = vmatprep.subr.mxu0 0.0
        %1438 = vmatpush1.msra.mxu0 0.0
        %1439 = vmatprep.subr.mxu0 0.0
        %1440 = vmatpush1.msra.mxu0 0.0
        %1441 = vmatprep.mubr.f32.mxu0 0.0
        %1442 = vmatmul.mubr.f32.gmra.mrb[0].mxu0 %v1375
        %v1443 = vpop.f32.mrb[0].mxu0
        %v1444 = vadd.f32 0.0, %v1443
        %v1445 = vpop.f32.mrb[0].mxu0
        %1446 = vdwg.mxu0
        %v1447 = vld [vmem:[%s5 + $0x18] sm:$0xff]
        %v1449 = vsel %vm564, %v1444, 0
        %1451 = vmatprep.subr.mxu0 0.0
        %1452 = vmatpush1.msra.mxu0 %v1447
        %1453 = vmatprep.subr.mxu0 0.0
        %1454 = vmatpush1.msra.mxu0 0.0
        %1455 = vmatprep.subr.mxu0 0.0
        %1456 = vmatpush1.msra.mxu0 0.0
        %1457 = vmatprep.subr.mxu0 0.0
        %1458 = vmatpush1.msra.mxu0 0.0
        %1459 = vmatprep.subr.mxu0 0.0
        %1460 = vmatpush1.msra.mxu0 0.0
        %1461 = vmatprep.subr.mxu0 0.0
        %1462 = vmatpush1.msra.mxu0 0.0
        %1463 = vmatprep.subr.mxu0 0.0
        %1464 = vmatpush1.msra.mxu0 0.0
        %1465 = vmatprep.subr.mxu0 0.0
        %1466 = vmatpush1.msra.mxu0 0.0
        %1467 = vmatprep.subr.mxu0 0.0
        %1468 = vmatpush1.msra.mxu0 0.0
        %1469 = vmatprep.subr.mxu0 0.0
        %1470 = vmatpush1.msra.mxu0 0.0
        %1471 = vmatprep.subr.mxu0 0.0
        %1472 = vmatpush1.msra.mxu0 0.0
        %1473 = vmatprep.subr.mxu0 0.0
        %1474 = vmatpush1.msra.mxu0 0.0
        %1475 = vmatprep.subr.mxu0 0.0
        %1476 = vmatpush1.msra.mxu0 0.0
        %1477 = vmatprep.subr.mxu0 0.0
        %1478 = vmatpush1.msra.mxu0 0.0
        %1479 = vmatprep.subr.mxu0 0.0
        %1480 = vmatpush1.msra.mxu0 0.0
        %1481 = vmatprep.subr.mxu0 0.0
        %1482 = vmatpush1.msra.mxu0 0.0
        %1483 = vmatprep.subr.mxu0 0.0
        %1484 = vmatpush1.msra.mxu0 0.0
        %1485 = vmatprep.subr.mxu0 0.0
        %1486 = vmatpush1.msra.mxu0 0.0
        %1487 = vmatprep.subr.mxu0 0.0
        %1488 = vmatpush1.msra.mxu0 0.0
        %1489 = vmatprep.subr.mxu0 0.0
        %1490 = vmatpush1.msra.mxu0 0.0
        %1491 = vmatprep.subr.mxu0 0.0
        %1492 = vmatpush1.msra.mxu0 0.0
        %1493 = vmatprep.subr.mxu0 0.0
        %1494 = vmatpush1.msra.mxu0 0.0
        %1495 = vmatprep.subr.mxu0 0.0
        %1496 = vmatpush1.msra.mxu0 0.0
        %1497 = vmatprep.subr.mxu0 0.0
        %1498 = vmatpush1.msra.mxu0 0.0
        %1499 = vmatprep.subr.mxu0 0.0
        %1500 = vmatpush1.msra.mxu0 0.0
        %1501 = vmatprep.subr.mxu0 0.0
        %1502 = vmatpush1.msra.mxu0 0.0
        %1503 = vmatprep.subr.mxu0 0.0
        %1504 = vmatpush1.msra.mxu0 0.0
        %1505 = vmatprep.subr.mxu0 0.0
        %1506 = vmatpush1.msra.mxu0 0.0
        %1507 = vmatprep.subr.mxu0 0.0
        %1508 = vmatpush1.msra.mxu0 0.0
        %1509 = vmatprep.subr.mxu0 0.0
        %1510 = vmatpush1.msra.mxu0 0.0
        %1511 = vmatprep.subr.mxu0 0.0
        %1512 = vmatpush1.msra.mxu0 0.0
        %1513 = vmatprep.subr.mxu0 0.0
        %1514 = vmatpush1.msra.mxu0 0.0
        %1515 = vmatprep.mubr.f32.mxu0 0.0
        %1516 = vmatmul.mubr.f32.gmra.mrb[0].mxu0 %v1449
        %v1517 = vpop.f32.mrb[0].mxu0
        %v1518 = vadd.f32 0.0, %v1517
        %v1519 = vpop.f32.mrb[0].mxu0
        %1520 = vdwg.mxu0
        %v1521 = vadd.f32 %v1281, %v1518
        %v1522 = vld [vmem:[%s7] sm:$0x1]
        %v1523 = vld [vmem:[%s8] sm:$0x1]
        %v1524 = vsel %vm439, %v1521, 0.0
        %1525 = vadd.xlane.f32.xlu0 %v1524
        %v1526 = vpop.xlane.xlu0 %1525
        %v1527 = vmul.f32 %v1526, %v443
        %v1528 = vsub.f32 %v1521, %v1527
        %v1529 = vmul.f32 %v1528, %v1528
        %v1530 = vsel %vm439, %v1529, 0.0
        %1531 = vadd.xlane.f32.xlu0 %v1530
        %v1532 = vpop.xlane.xlu0 %1531
        %v1533 = vmul.f32 %v1532, %v443
        %v1534 = vadd.f32 %v1533, 1e-05
        %v1535 = vrsqrt.pop %v1534
        %v1536 = vmul.f32 %v1528, %v1535
        %v1538 = vlaneseq
        %v1539 = vshrl.u32 %v1538, 7
        %v1540 = vsub.s32 0, %v1539
        %v1541 = vrot.slane %v1522, %v1540
        %v1543 = vmul.f32 %v1536, %v1541
        %v1545 = vlaneseq
        %v1546 = vshrl.u32 %v1545, 7
        %v1547 = vsub.s32 0, %v1546
        %v1548 = vrot.slane %v1523, %v1547
        %v1550 = vadd.f32 %v1543, %v1548
        %v1551 = vld [vmem:[%s9] sm:$0xff]
        %v1552 = vld [vmem:[%s9 + $0x8] sm:$0xff]
        %v1553 = vld [vmem:[%s9 + $0x10] sm:$0xff]
        %v1554 = vld [vmem:[%s9 + $0x18] sm:$0xff]
        %v1555 = vld [vmem:[%s10] sm:$0x1]
        %v1557 = vlaneseq
        %v1558 = vshrl.u32 %v1557, 7
        %v1559 = vsub.s32 0, %v1558
        %v1560 = vrot.slane %v1555, %v1559
        %v1563 = vsel %vm439, %v1550, 0
        %1565 = vmatprep.subr.mxu0 0.0
        %1566 = vmatpush1.msra.mxu0 %v1551
        %1567 = vmatprep.subr.mxu0 0.0
        %1568 = vmatpush1.msra.mxu0 %v1552
        %1569 = vmatprep.subr.mxu0 0.0
        %1570 = vmatpush1.msra.mxu0 %v1553
        %1571 = vmatprep.subr.mxu0 0.0
        %1572 = vmatpush1.msra.mxu0 %v1554
        %1573 = vmatprep.subr.mxu0 0.0
        %1574 = vmatpush1.msra.mxu0 0.0
        %1575 = vmatprep.subr.mxu0 0.0
        %1576 = vmatpush1.msra.mxu0 0.0
        %1577 = vmatprep.subr.mxu0 0.0
        %1578 = vmatpush1.msra.mxu0 0.0
        %1579 = vmatprep.subr.mxu0 0.0
        %1580 = vmatpush1.msra.mxu0 0.0
        %1581 = vmatprep.subr.mxu0 0.0
        %1582 = vmatpush1.msra.mxu0 0.0
        %1583 = vmatprep.subr.mxu0 0.0
        %1584 = vmatpush1.msra.mxu0 0.0
        %1585 = vmatprep.subr.mxu0 0.0
        %1586 = vmatpush1.msra.mxu0 0.0
        %1587 = vmatprep.subr.mxu0 0.0
        %1588 = vmatpush1.msra.mxu0 0.0
        %1589 = vmatprep.subr.mxu0 0.0
        %1590 = vmatpush1.msra.mxu0 0.0
        %1591 = vmatprep.subr.mxu0 0.0
        %1592 = vmatpush1.msra.mxu0 0.0
        %1593 = vmatprep.subr.mxu0 0.0
        %1594 = vmatpush1.msra.mxu0 0.0
        %1595 = vmatprep.subr.mxu0 0.0
        %1596 = vmatpush1.msra.mxu0 0.0
        %1597 = vmatprep.subr.mxu0 0.0
        %1598 = vmatpush1.msra.mxu0 0.0
        %1599 = vmatprep.subr.mxu0 0.0
        %1600 = vmatpush1.msra.mxu0 0.0
        %1601 = vmatprep.subr.mxu0 0.0
        %1602 = vmatpush1.msra.mxu0 0.0
        %1603 = vmatprep.subr.mxu0 0.0
        %1604 = vmatpush1.msra.mxu0 0.0
        %1605 = vmatprep.subr.mxu0 0.0
        %1606 = vmatpush1.msra.mxu0 0.0
        %1607 = vmatprep.subr.mxu0 0.0
        %1608 = vmatpush1.msra.mxu0 0.0
        %1609 = vmatprep.subr.mxu0 0.0
        %1610 = vmatpush1.msra.mxu0 0.0
        %1611 = vmatprep.subr.mxu0 0.0
        %1612 = vmatpush1.msra.mxu0 0.0
        %1613 = vmatprep.subr.mxu0 0.0
        %1614 = vmatpush1.msra.mxu0 0.0
        %1615 = vmatprep.subr.mxu0 0.0
        %1616 = vmatpush1.msra.mxu0 0.0
        %1617 = vmatprep.subr.mxu0 0.0
        %1618 = vmatpush1.msra.mxu0 0.0
        %1619 = vmatprep.subr.mxu0 0.0
        %1620 = vmatpush1.msra.mxu0 0.0
        %1621 = vmatprep.subr.mxu0 0.0
        %1622 = vmatpush1.msra.mxu0 0.0
        %1623 = vmatprep.subr.mxu0 0.0
        %1624 = vmatpush1.msra.mxu0 0.0
        %1625 = vmatprep.subr.mxu0 0.0
        %1626 = vmatpush1.msra.mxu0 0.0
        %1627 = vmatprep.subr.mxu0 0.0
        %1628 = vmatpush1.msra.mxu0 0.0
        %1629 = vmatprep.mubr.f32.mxu0 0.0
        %1630 = vmatmul.mubr.f32.gmra.mrb[0].mxu0 %v1563
        %v1631 = vpop.f32.mrb[0].mxu0
        %v1632 = vadd.f32 %v1560, %v1631
        %v1633 = vpop.f32.mrb[0].mxu0
        %1634 = vdwg.mxu0
        %v1635 = vmul.f32 %v1632, 0.5
        %v1636 = vmul.f32 %v1632, 0.044715
        %v1637 = vmul.f32 %v1636, %v1632
        %v1638 = vmul.f32 %v1637, %v1632
        %v1639 = vadd.f32 %v1632, %v1638
        %v1640 = vmul.f32 %v1639, 0.7978846
        %v1641 = vtanh.pop %v1640
        %v1642 = vadd.f32 %v1641, 1.0
        %v1643 = vmul.f32 %v1635, %v1642
        %v1644 = vld [vmem:[%s11] sm:$0xff]
        %v1645 = vld [vmem:[%s11 + $0x8] sm:$0xff]
        %v1646 = vld [vmem:[%s11 + $0x10] sm:$0xff]
        %v1647 = vld [vmem:[%s11 + $0x18] sm:$0xff]
        %v1648 = vld [vmem:[%s11 + $0x20] sm:$0xff]
        %v1649 = vld [vmem:[%s11 + $0x28] sm:$0xff]
        %v1650 = vld [vmem:[%s11 + $0x30] sm:$0xff]
        %v1651 = vld [vmem:[%s11 + $0x38] sm:$0xff]
        %v1652 = vld [vmem:[%s11 + $0x40] sm:$0xff]
        %v1653 = vld [vmem:[%s11 + $0x48] sm:$0xff]
        %v1654 = vld [vmem:[%s11 + $0x50] sm:$0xff]
        %v1655 = vld [vmem:[%s11 + $0x58] sm:$0xff]
        %v1656 = vld [vmem:[%s11 + $0x60] sm:$0xff]
        %v1657 = vld [vmem:[%s11 + $0x68] sm:$0xff]
        %v1658 = vld [vmem:[%s11 + $0x70] sm:$0xff]
        %v1659 = vld [vmem:[%s11 + $0x78] sm:$0xff]
        %v1660 = vld [vmem:[%s12] sm:$0x1]
        %v1662 = vlaneseq
        %v1663 = vshrl.u32 %v1662, 7
        %v1664 = vsub.s32 0, %v1663
        %v1665 = vrot.slane %v1660, %v1664
        %1667 = vmatprep.subr.mxu0 0.0
        %1668 = vmatpush1.msra.mxu0 %v1644
        %1669 = vmatprep.subr.mxu0 0.0
        %1670 = vmatpush1.msra.mxu0 %v1645
        %1671 = vmatprep.subr.mxu0 0.0
        %1672 = vmatpush1.msra.mxu0 %v1646
        %1673 = vmatprep.subr.mxu0 0.0
        %1674 = vmatpush1.msra.mxu0 %v1647
        %1675 = vmatprep.subr.mxu0 0.0
        %1676 = vmatpush1.msra.mxu0 %v1648
        %1677 = vmatprep.subr.mxu0 0.0
        %1678 = vmatpush1.msra.mxu0 %v1649
        %1679 = vmatprep.subr.mxu0 0.0
        %1680 = vmatpush1.msra.mxu0 %v1650
        %1681 = vmatprep.subr.mxu0 0.0
        %1682 = vmatpush1.msra.mxu0 %v1651
        %1683 = vmatprep.subr.mxu0 0.0
        %1684 = vmatpush1.msra.mxu0 %v1652
        %1685 = vmatprep.subr.mxu0 0.0
        %1686 = vmatpush1.msra.mxu0 %v1653
        %1687 = vmatprep.subr.mxu0 0.0
        %1688 = vmatpush1.msra.mxu0 %v1654
        %1689 = vmatprep.subr.mxu0 0.0
        %1690 = vmatpush1.msra.mxu0 %v1655
        %1691 = vmatprep.subr.mxu0 0.0
        %1692 = vmatpush1.msra.mxu0 %v1656
        %1693 = vmatprep.subr.mxu0 0.0
        %1694 = vmatpush1.msra.mxu0 %v1657
        %1695 = vmatprep.subr.mxu0 0.0
        %1696 = vmatpush1.msra.mxu0 %v1658
        %1697 = vmatprep.subr.mxu0 0.0
        %1698 = vmatpush1.msra.mxu0 %v1659
        %1699 = vmatprep.subr.mxu0 0.0
        %1700 = vmatpush1.msra.mxu0 0.0
        %1701 = vmatprep.subr.mxu0 0.0
        %1702 = vmatpush1.msra.mxu0 0.0
        %1703 = vmatprep.subr.mxu0 0.0
        %1704 = vmatpush1.msra.mxu0 0.0
        %1705 = vmatprep.subr.mxu0 0.0
        %1706 = vmatpush1.msra.mxu0 0.0
        %1707 = vmatprep.subr.mxu0 0.0
        %1708 = vmatpush1.msra.mxu0 0.0
        %1709 = vmatprep.subr.mxu0 0.0
        %1710 = vmatpush1.msra.mxu0 0.0
        %1711 = vmatprep.subr.mxu0 0.0
        %1712 = vmatpush1.msra.mxu0 0.0
        %1713 = vmatprep.subr.mxu0 0.0
        %1714 = vmatpush1.msra.mxu0 0.0
        %1715 = vmatprep.subr.mxu0 0.0
        %1716 = vmatpush1.msra.mxu0 0.0
        %1717 = vmatprep.subr.mxu0 0.0
        %1718 = vmatpush1.msra.mxu0 0.0
        %1719 = vmatprep.subr.mxu0 0.0
        %1720 = vmatpush1.msra.mxu0 0.0
        %1721 = vmatprep.subr.mxu0 0.0
        %1722 = vmatpush1.msra.mxu0 0.0
        %1723 = vmatprep.subr.mxu0 0.0
        %1724 = vmatpush1.msra.mxu0 0.0
        %1725 = vmatprep.subr.mxu0 0.0
        %1726 = vmatpush1.msra.mxu0 0.0
        %1727 = vmatprep.subr.mxu0 0.0
        %1728 = vmatpush1.msra.mxu0 0.0
        %1729 = vmatprep.subr.mxu0 0.0
        %1730 = vmatpush1.msra.mxu0 0.0
        %1731 = vmatprep.mubr.f32.mxu0 0.0
        %1732 = vmatmul.mubr.f32.gmra.mrb[0].mxu0 %v1643
        %v1733 = vpop.f32.mrb[0].mxu0
        %v1734 = vadd.f32 %v1665, %v1733
        %v1735 = vpop.f32.mrb[0].mxu0
        %1736 = vdwg.mxu0
        %v1737 = vadd.f32 %v1521, %v1734
        %1738 = vst.msk [vmem:[%s431] sm:$0xff] %vm439, %v1737
        %s1739 = sand.u32 %s313, 1
        %s1740 = scalar_lea.sflag [#allocation3], %s1739
        %s1741 = sand.u32 %s313, 1
        %s1742 = smul.addr %s1741, 8
        %s1743 = scalar_lea.vmem [#allocation2], %s1742
        // Predicated region
        $region73: #{tpu_custom_call.1} parent=71 // pred_check
          %p1744 = pneg %p323
        $region74: #{tpu_custom_call.1} parent=71 // pred_check_branch
          %1746 = sbr.rel (%p1744) target = $region76
        $region75: #{tpu_custom_call.1} parent=71 // pred_region
          %s1748 = ssub.s32 128, 128
          %1749 = vsyncadd %s1740, %s1748
          %s1750 = smul.addr %s27, 128
          %s1751 = scalar_lea.hbm %s13, %s1750
          %s1753 = sshll.u32 %s1743, 4
          %s1754 = int_to_ptr.vmem [resolvable:$true] %s1753
          %1756 = dma.vmem_to_hbm [thread:$0]  %s1754, 128, %s1751, %s1740
        $region76: #{tpu_custom_call.1} parent=71 // pred_fallthru
          _
      $region72: #{tpu_custom_call.1} parent=5 // pred_fallthru
        _
      %p1757 = scmp.le.s32.totalorder 2, %s22
      // Predicated region
      $region77: #{tpu_custom_call.1} parent=5 // pred_check
        %p1758 = pneg %p1757
      $region78: #{tpu_custom_call.1} parent=5 // pred_check_branch
        %1760 = sbr.rel (%p1758) target = $region80
      $region79: #{tpu_custom_call.1} parent=5 // pred_region
        %s1761 = ssub.s32 %s22, 2
        // Predicated region
        $region81: #{tpu_custom_call.1} parent=79 // pred_check
          %p1762 = pneg %p329
        $region82: #{tpu_custom_call.1} parent=79 // pred_check_branch
          %1764 = sbr.rel (%p1762) target = $region84
        $region83: #{tpu_custom_call.1} parent=79 // pred_region
          %s1765 = sand.u32 %s314, 1
          %s1766 = scalar_lea.sflag [#allocation3], %s1765
          %s1767 = sand.u32 %s314, 1
          %s1768 = smul.addr %s1767, 8
          %s1769 = scalar_lea.vmem [#allocation2], %s1768
          %1770 = dma.done %s1766, 128
        $region84: #{tpu_custom_call.1} parent=79 // pred_fallthru
          _
      $region80: #{tpu_custom_call.1} parent=5 // pred_fallthru
        _
    $region6: #{tpu_custom_call.1} parent=1 // loop_footer
      %s26 = sadd.s32 1, %s22
    $region7: #{tpu_custom_call.1} parent=1 // loop_footer_branch
      %21 = sbr.rel target = $region3
    $region8: #{tpu_custom_call.1} parent=1 // loop_exit
      _
    %1771 = vsyncpa [#allocation3], 1
    %s1772 = scalar_lea.sflag [#allocation3], 1
    %1773 = vsyncpa %s1772, 1

</llo_original>
